<compile_context>
chip_gen: v7x
topology: tpu7x:2x2x1
jax: 0.10.0
libtpu: 0.0.40
codegen_flags: <defaults>
</compile_context>

<pallas_src>
import functools

import jax
import jax.numpy as jnp
from jax import lax
from jax.experimental import pallas as pl
from jax.experimental.pallas import tpu as pltpu


# ---------------------------------------------------------------------------
# matches torch.nn.LayerNorm (eps=1e-5); g/b broadcast along rows
# ---------------------------------------------------------------------------
def _layernorm(x, g, b, eps=1e-5):
    mu = jnp.mean(x, axis=-1, keepdims=True)
    var = jnp.mean((x - mu) ** 2, axis=-1, keepdims=True)
    return (x - mu) * jax.lax.rsqrt(var + eps) * g + b


# ---------------------------------------------------------------------------
# single fused kernel: patch linear + transformer block + classification head
# ---------------------------------------------------------------------------
def _fused_model_kernel(
    patches_ref,        # (B*P, PD)       flattened image patches
    head_ref,           # (B*(1+T), E)    [cls ; text] rows per batch element
    wa_ref,             # (PD+E, 3E)      rows 0:PD lanes 0:E = patch_w ; rows PD: = wqkv
    wb_ref,             # (2E, E)         rows 0:E = wo ; rows E:2E = tr_w
    vec_ref,            # (16, 3E)        row 0 = bqkv ; rows 1..9 = (1,E) vectors
    o_ref,              # (B, E)          output
    tok_ref,            # (B*N, E)        scratch: assembled tokens
    ho_ref,             # (B*N, E)        scratch: per-head attention outputs
    m_ref,              # (B, E)          scratch: per-batch token means
    *, B, P, CT, E, heads, PD,
):
    N = CT + P
    d = E // heads
    inv_scale = 1.0 / (E ** 0.5)

    # ---- parameters: sliced / loaded ONCE (hoisted out of every loop) ----
    pw     = wa_ref[0:PD, 0:E]          # (PD, E)
    wqkv   = wa_ref[PD:PD + E, :]       # (E, 3E)
    wo     = wb_ref[0:E, :]             # (E, E)
    trw    = wb_ref[E:2 * E, :]         # (E, E)
    bqkv   = vec_ref[0:1, :]            # (1, 3E)
    pb     = vec_ref[1:2, 0:E]
    ln1g   = vec_ref[2:3, 0:E]
    ln1b   = vec_ref[3:4, 0:E]
    bo     = vec_ref[4:5, 0:E]
    ln2g   = vec_ref[5:6, 0:E]
    ln2b   = vec_ref[6:7, 0:E]
    trg    = vec_ref[7:8, 0:E]
    trb    = vec_ref[8:9, 0:E]
    trbias = vec_ref[9:10, 0:E]

    # ---- patch embedding: one (B*P, PD) @ (PD, E) MXU push for whole batch ----
    emb = jnp.dot(patches_ref[...], pw, preferred_element_type=jnp.float32) + pb

    # ---- assemble tokens into VMEM scratch (no jnp.concatenate) ----
    # Per-batch order is [cls; text; patches]; attention/LN are permutation-
    # equivariant and the token mean is permutation-invariant, so the final
    # (B, E) output is identical to the [cls; patches; text] reference order.
    for b in range(B):
        r0 = b * N
        tok_ref[r0:r0 + CT, :] = head_ref[b * CT:(b + 1) * CT, :]
        tok_ref[r0 + CT:r0 + N, :] = emb[b * P:(b + 1) * P, :]

    xall = tok_ref[...]                                        # (B*N, E)

    # ---- LN1 + fused QKV: one (B*N, E) @ (E, 3E) matmul ----
    h1 = _layernorm(xall, ln1g, ln1b)
    qkv = jnp.dot(h1, wqkv, preferred_element_type=jnp.float32) + bqkv

    # ---- attention: only the (N, N) matmuls stay per (batch, head) ----
    for b in range(B):
        r0 = b * N
        for hd in range(heads):
            lo = hd * d
            qh = qkv[r0:r0 + N, lo:lo + d]
            kh = qkv[r0:r0 + N, E + lo:E + lo + d]
            vh = qkv[r0:r0 + N, 2 * E + lo:2 * E + lo + d]
            # q · kᵀ without materializing the transpose
            s = lax.dot_general(qh, kh, (((1,), (1,)), ((), ())),
                                preferred_element_type=jnp.float32)   # (N, N)
            s = s - jnp.max(s, axis=-1, keepdims=True)
            es = jnp.exp(s)
            # NOTE: softmax first, THEN 1/sqrt(E) scale — matches the PyTorch
            # module exactly; the scale is folded into the EUP reciprocal.
            p = es * (pl.reciprocal(jnp.sum(es, axis=-1, keepdims=True),
                                    approx=True) * inv_scale)
            oh = jnp.dot(p, vh, preferred_element_type=jnp.float32)   # (N, d)
            ho_ref[r0:r0 + N, lo:lo + d] = oh

    # ---- Wo projection / LN2 / residual: batched over (B*N, E) ----
    y = jnp.dot(ho_ref[...], wo, preferred_element_type=jnp.float32) + bo
    y = _layernorm(y, ln2g, ln2b)
    blk = y + xall

    # ---- head: per-batch token mean -> LN -> linear ----
    for b in range(B):
        m_ref[b:b + 1, :] = jnp.mean(blk[b * N:(b + 1) * N, :],
                                     axis=0, keepdims=True)
    hm = _layernorm(m_ref[...], trg, trb)
    o_ref[...] = jnp.dot(hm, trw, preferred_element_type=jnp.float32) + trbias


def _full_spec(shape):
    zeros = (0,) * len(shape)
    return pl.BlockSpec(shape, lambda: zeros)


# ---------------------------------------------------------------------------
# wrapper: layout glue + single pallas_call
# ---------------------------------------------------------------------------
def model_forward(packed, x, text_embeds, *, patch_size, emb_size, heads):
    B, C, H, W = x.shape
    nh, nw = H // patch_size, W // patch_size
    P = nh * nw
    PD = patch_size * patch_size * C
    E = emb_size
    T = text_embeds.shape[1]
    CT = 1 + T
    N = CT + P

    # einops 'b c (h p1)(w p2) -> b (h w) (p1 p2 c)' — pure layout glue
    patches = x.reshape(B, C, nh, patch_size, nw, patch_size)
    patches = patches.transpose(0, 2, 4, 3, 5, 1)
    patches2d = patches.reshape(B * P, PD)

    # pre-assemble [cls ; text] per batch element in JAX (layout glue)
    cls = jnp.broadcast_to(packed["cls_token"][None, :, :], (B, 1, E))
    head_tokens = jnp.concatenate([cls, text_embeds], axis=1).reshape(B * CT, E)

    kernel = functools.partial(_fused_model_kernel,
                               B=B, P=P, CT=CT, E=E, heads=heads, PD=PD)

    args = (patches2d, head_tokens,
            packed["slab_a"], packed["slab_b"], packed["vecs"])

    return pl.pallas_call(
        kernel,
        out_shape=jax.ShapeDtypeStruct((B, E), jnp.float32),
        in_specs=[_full_spec(a.shape) for a in args],
        out_specs=_full_spec((B, E)),
        scratch_shapes=[
            pltpu.VMEM((B * N, E), jnp.float32),   # assembled tokens
            pltpu.VMEM((B * N, E), jnp.float32),   # per-head attention outputs
            pltpu.VMEM((B, E), jnp.float32),       # per-batch token means
        ],
    )(*args)


# ---------------------------------------------------------------------------
# parameter init (torch-like defaults) + one-time packing into 3 slabs
# ---------------------------------------------------------------------------
def init_params(key, emb_size, in_channels, patch_size):
    E = emb_size
    patch_dim = patch_size * patch_size * in_channels
    keys = jax.random.split(key, 12)
    std = 0.02
    return {
        "patch_w": jax.random.normal(keys[0], (patch_dim, E), jnp.float32) * std,
        "patch_b": jax.random.normal(keys[1], (1, E), jnp.float32) * std,
        "cls_token": jax.random.normal(keys[2], (1, E), jnp.float32),
        "ln1_g": jnp.ones((1, E), jnp.float32),
        "ln1_b": jnp.zeros((1, E), jnp.float32),
        "wqkv": jax.random.normal(keys[3], (E, 3 * E), jnp.float32) * std,
        "bqkv": jax.random.normal(keys[4], (1, 3 * E), jnp.float32) * std,
        "wo": jax.random.normal(keys[5], (E, E), jnp.float32) * std,
        "bo": jax.random.normal(keys[6], (1, E), jnp.float32) * std,
        "ln2_g": jnp.ones((1, E), jnp.float32),
        "ln2_b": jnp.zeros((1, E), jnp.float32),
        "tr_ln_g": jnp.ones((1, E), jnp.float32),
        "tr_ln_b": jnp.zeros((1, E), jnp.float32),
        "tr_w": jax.random.normal(keys[7], (E, E), jnp.float32) * std,
        "tr_b": jax.random.normal(keys[8], (1, E), jnp.float32) * std,
    }


def pack_params(params, *, patch_dim, emb_size):
    """One-time (load-time) packing of all weights into 3 DMA-friendly slabs."""
    E = emb_size
    slab_a = jnp.zeros((patch_dim + E, 3 * E), jnp.float32)
    slab_a = slab_a.at[:patch_dim, :E].set(params["patch_w"])
    slab_a = slab_a.at[patch_dim:, :].set(params["wqkv"])
    slab_b = jnp.concatenate([params["wo"], params["tr_w"]], axis=0)   # (2E, E)
    vecs = jnp.zeros((16, 3 * E), jnp.float32)
    vecs = vecs.at[0, :].set(params["bqkv"][0])
    order = ["patch_b", "ln1_g", "ln1_b", "bo", "ln2_g", "ln2_b",
             "tr_ln_g", "tr_ln_b", "tr_b"]
    for i, name in enumerate(order):
        vecs = vecs.at[i + 1, :E].set(params[name][0])
    return {"slab_a": slab_a, "slab_b": slab_b, "vecs": vecs,
            "cls_token": params["cls_token"]}


# ---------------------------------------------------------------------------
# pure-JAX reference (exact PyTorch semantics / token order) for correctness
# ---------------------------------------------------------------------------
def reference_forward(params, x, text_embeds, *, patch_size, emb_size, heads):
    B, C, H, W = x.shape
    nh, nw = H // patch_size, W // patch_size
    E = emb_size
    patches = x.reshape(B, C, nh, patch_size, nw, patch_size)
    patches = patches.transpose(0, 2, 4, 3, 5, 1).reshape(B, nh * nw, -1)
    emb = patches @ params["patch_w"] + params["patch_b"][0]
    cls = jnp.broadcast_to(params["cls_token"][None], (B, 1, E))
    tok = jnp.concatenate([cls, emb, text_embeds], axis=1)

    h = _layernorm(tok, params["ln1_g"][0], params["ln1_b"][0])
    wqkv, bqkv = params["wqkv"], params["bqkv"][0]
    q = h @ wqkv[:, :E] + bqkv[:E]
    k = h @ wqkv[:, E:2 * E] + bqkv[E:2 * E]
    v = h @ wqkv[:, 2 * E:] + bqkv[2 * E:]
    N = tok.shape[1]
    d = E // heads
    q = q.reshape(B, N, heads, d).transpose(0, 2, 1, 3)
    k = k.reshape(B, N, heads, d).transpose(0, 2, 1, 3)
    v = v.reshape(B, N, heads, d).transpose(0, 2, 1, 3)
    s = jnp.einsum("bhqd,bhkd->bhqk", q, k)
    p = jax.nn.softmax(s, axis=-1) / (E ** 0.5)
    o = jnp.einsum("bhal,bhlv->bhav", p, v)
    o = o.transpose(0, 2, 1, 3).reshape(B, N, E)
    o = o @ params["wo"] + params["bo"][0]
    o = _layernorm(o, params["ln2_g"][0], params["ln2_b"][0])
    blk = o + tok

    m = jnp.mean(blk, axis=1)
    m = _layernorm(m, params["tr_ln_g"][0], params["tr_ln_b"][0])
    return m @ params["tr_w"] + params["tr_b"][0]


if __name__ == "__main__":
    EMB = 32
    HEADS = 2
    IN_CH = 1
    PATCH = 4
    IMG = 16          # -> (IMG/PATCH)^2 = 16 patches
    B = 2
    TEXT_LEN = 4      # N = 1 + 16 + 4 = 21 tokens

    key = jax.random.PRNGKey(0)
    kp, kx, kt = jax.random.split(key, 3)
    params = init_params(kp, EMB, IN_CH, PATCH)
    packed = pack_params(params, patch_dim=PATCH * PATCH * IN_CH, emb_size=EMB)

    x = jax.random.normal(kx, (B, IN_CH, IMG, IMG), jnp.float32)          # NCHW
    text_embeds = jax.random.normal(kt, (B, TEXT_LEN, EMB), jnp.float32)  # (B, T, E)

    fwd = jax.jit(functools.partial(model_forward,
                                    patch_size=PATCH, emb_size=EMB, heads=HEADS))
    out = jax.block_until_ready(fwd(packed, x, text_embeds))

    ref = reference_forward(
        params, x, text_embeds, patch_size=PATCH, emb_size=EMB, heads=HEADS)

    assert out.shape == (B, EMB)
    # tolerance loosened slightly (vs 1e-4) for the approximate EUP reciprocal
    # used in the softmax denominator, per the perf-review correctness note.
    assert jnp.allclose(out, ref, atol=2e-3, rtol=2e-3)
    print("KERNEL_OK")
</pallas_src>

<mosaic_0001>
module attributes {stable_mosaic.version = 11 : i64} {
  func.func @_fused_model_kernel(%arg0: memref<32x16xf32, #tpu.memory_space<vmem>>, %arg1: memref<10x32xf32, #tpu.memory_space<vmem>>, %arg2: memref<48x96xf32, #tpu.memory_space<vmem>>, %arg3: memref<64x32xf32, #tpu.memory_space<vmem>>, %arg4: memref<16x96xf32, #tpu.memory_space<vmem>>, %arg5: memref<2x32xf32, #tpu.memory_space<vmem>>, %arg6: memref<42x32xf32, #tpu.memory_space<vmem>>, %arg7: memref<42x32xf32, #tpu.memory_space<vmem>>, %arg8: memref<2x32xf32, #tpu.memory_space<vmem>>) attributes {dimension_semantics = [], scalar_prefetch = 0 : i64, scratch_operands = 3 : i64, tpu.core_type = #tpu.core_type<tc>} {
    %c0 = arith.constant 0 : index
    %c0_0 = arith.constant 0 : index
    %0 = vector.load %arg2[%c0, %c0_0] : memref<48x96xf32, #tpu.memory_space<vmem>>, vector<16x32xf32>
    %c16 = arith.constant 16 : index
    %c0_1 = arith.constant 0 : index
    %1 = vector.load %arg2[%c16, %c0_1] : memref<48x96xf32, #tpu.memory_space<vmem>>, vector<32x96xf32>
    %c0_2 = arith.constant 0 : index
    %c0_3 = arith.constant 0 : index
    %2 = vector.load %arg3[%c0_2, %c0_3] : memref<64x32xf32, #tpu.memory_space<vmem>>, vector<32x32xf32>
    %c32 = arith.constant 32 : index
    %c0_4 = arith.constant 0 : index
    %3 = vector.load %arg3[%c32, %c0_4] : memref<64x32xf32, #tpu.memory_space<vmem>>, vector<32x32xf32>
    %c0_5 = arith.constant 0 : index
    %c0_6 = arith.constant 0 : index
    %4 = vector.load %arg4[%c0_5, %c0_6] : memref<16x96xf32, #tpu.memory_space<vmem>>, vector<1x96xf32>
    %c1 = arith.constant 1 : index
    %c0_7 = arith.constant 0 : index
    %5 = vector.load %arg4[%c1, %c0_7] : memref<16x96xf32, #tpu.memory_space<vmem>>, vector<1x32xf32>
    %c2 = arith.constant 2 : index
    %c0_8 = arith.constant 0 : index
    %6 = vector.load %arg4[%c2, %c0_8] : memref<16x96xf32, #tpu.memory_space<vmem>>, vector<1x32xf32>
    %c3 = arith.constant 3 : index
    %c0_9 = arith.constant 0 : index
    %7 = vector.load %arg4[%c3, %c0_9] : memref<16x96xf32, #tpu.memory_space<vmem>>, vector<1x32xf32>
    %c4 = arith.constant 4 : index
    %c0_10 = arith.constant 0 : index
    %8 = vector.load %arg4[%c4, %c0_10] : memref<16x96xf32, #tpu.memory_space<vmem>>, vector<1x32xf32>
    %c5 = arith.constant 5 : index
    %c0_11 = arith.constant 0 : index
    %9 = vector.load %arg4[%c5, %c0_11] : memref<16x96xf32, #tpu.memory_space<vmem>>, vector<1x32xf32>
    %c6 = arith.constant 6 : index
    %c0_12 = arith.constant 0 : index
    %10 = vector.load %arg4[%c6, %c0_12] : memref<16x96xf32, #tpu.memory_space<vmem>>, vector<1x32xf32>
    %c7 = arith.constant 7 : index
    %c0_13 = arith.constant 0 : index
    %11 = vector.load %arg4[%c7, %c0_13] : memref<16x96xf32, #tpu.memory_space<vmem>>, vector<1x32xf32>
    %c8 = arith.constant 8 : index
    %c0_14 = arith.constant 0 : index
    %12 = vector.load %arg4[%c8, %c0_14] : memref<16x96xf32, #tpu.memory_space<vmem>>, vector<1x32xf32>
    %c9 = arith.constant 9 : index
    %c0_15 = arith.constant 0 : index
    %13 = vector.load %arg4[%c9, %c0_15] : memref<16x96xf32, #tpu.memory_space<vmem>>, vector<1x32xf32>
    %c0_16 = arith.constant 0 : index
    %c0_17 = arith.constant 0 : index
    %14 = vector.load %arg0[%c0_16, %c0_17] : memref<32x16xf32, #tpu.memory_space<vmem>>, vector<32x16xf32>
    %cst = arith.constant dense<0.000000e+00> : vector<32x32xf32>
    %15 = tpu.matmul %14, %0, %cst {dimension_numbers = #tpu.dot_dimension_numbers<[1], [0], [0], [1], [0, 0, 1, 1], [], []>} : vector<32x16xf32>, vector<16x32xf32>, vector<32x32xf32> -> vector<32x32xf32>
    %16 = vector.broadcast %5 : vector<1x32xf32> to vector<32x32xf32>
    %17 = arith.addf %15, %16 : vector<32x32xf32>
    %c0_18 = arith.constant 0 : index
    %c0_19 = arith.constant 0 : index
    %18 = vector.load %arg1[%c0_18, %c0_19] : memref<10x32xf32, #tpu.memory_space<vmem>>, vector<5x32xf32>
    %c0_20 = arith.constant 0 : index
    %c0_21 = arith.constant 0 : index
    %19 = vector.load %arg6[%c0_20, %c0_21] : memref<42x32xf32, #tpu.memory_space<vmem>>, vector<5x32xf32>
    tpu.vector_store %arg6[%c0_20, %c0_21], %18 {strides = array<i32>} : memref<42x32xf32, #tpu.memory_space<vmem>>, vector<5x32xf32>,
    %20 = vector.extract_strided_slice %17 {offsets = [0, 0], sizes = [16, 32], strides = [1, 1]} : vector<32x32xf32> to vector<16x32xf32>
    %c5_22 = arith.constant 5 : index
    %c0_23 = arith.constant 0 : index
    %21 = vector.load %arg6[%c5_22, %c0_23] : memref<42x32xf32, #tpu.memory_space<vmem>>, vector<16x32xf32>
    tpu.vector_store %arg6[%c5_22, %c0_23], %20 {strides = array<i32>} : memref<42x32xf32, #tpu.memory_space<vmem>>, vector<16x32xf32>,
    %c5_24 = arith.constant 5 : index
    %c0_25 = arith.constant 0 : index
    %22 = vector.load %arg1[%c5_24, %c0_25] : memref<10x32xf32, #tpu.memory_space<vmem>>, vector<5x32xf32>
    %c21 = arith.constant 21 : index
    %c0_26 = arith.constant 0 : index
    %23 = vector.load %arg6[%c21, %c0_26] : memref<42x32xf32, #tpu.memory_space<vmem>>, vector<5x32xf32>
    tpu.vector_store %arg6[%c21, %c0_26], %22 {strides = array<i32>} : memref<42x32xf32, #tpu.memory_space<vmem>>, vector<5x32xf32>,
    %24 = vector.extract_strided_slice %17 {offsets = [16, 0], sizes = [16, 32], strides = [1, 1]} : vector<32x32xf32> to vector<16x32xf32>
    %c26 = arith.constant 26 : index
    %c0_27 = arith.constant 0 : index
    %25 = vector.load %arg6[%c26, %c0_27] : memref<42x32xf32, #tpu.memory_space<vmem>>, vector<16x32xf32>
    tpu.vector_store %arg6[%c26, %c0_27], %24 {strides = array<i32>} : memref<42x32xf32, #tpu.memory_space<vmem>>, vector<16x32xf32>,
    %c0_28 = arith.constant 0 : index
    %c0_29 = arith.constant 0 : index
    %26 = vector.load %arg6[%c0_28, %c0_29] : memref<42x32xf32, #tpu.memory_space<vmem>>, vector<42x32xf32>
    %cst_30 = arith.constant dense<0.000000e+00> : vector<42xf32>
    %27 = vector.multi_reduction <add>, %26, %cst_30 [1] : vector<42x32xf32> to vector<42xf32>
    %28 = vector.shape_cast %27 : vector<42xf32> to vector<42x1xf32>
    %cst_31 = arith.constant 3.200000e+01 : f32
    %29 = vector.broadcast %cst_31 : f32 to vector<42x1xf32>
    %30 = arith.divf %28, %29 : vector<42x1xf32>
    %31 = vector.broadcast %30 : vector<42x1xf32> to vector<42x32xf32>
    %32 = arith.subf %26, %31 : vector<42x32xf32>
    %33 = arith.mulf %32, %32 : vector<42x32xf32>
    %cst_32 = arith.constant dense<0.000000e+00> : vector<42xf32>
    %34 = vector.multi_reduction <add>, %33, %cst_32 [1] : vector<42x32xf32> to vector<42xf32>
    %35 = vector.shape_cast %34 : vector<42xf32> to vector<42x1xf32>
    %cst_33 = arith.constant 3.200000e+01 : f32
    %36 = vector.broadcast %cst_33 : f32 to vector<42x1xf32>
    %37 = arith.divf %35, %36 : vector<42x1xf32>
    %38 = vector.broadcast %30 : vector<42x1xf32> to vector<42x32xf32>
    %39 = arith.subf %26, %38 : vector<42x32xf32>
    %cst_34 = arith.constant 9.99999974E-6 : f32
    %40 = vector.broadcast %cst_34 : f32 to vector<42x1xf32>
    %41 = arith.addf %37, %40 : vector<42x1xf32>
    %42 = math.rsqrt %41 : vector<42x1xf32>
    %43 = vector.broadcast %42 : vector<42x1xf32> to vector<42x32xf32>
    %44 = arith.mulf %39, %43 : vector<42x32xf32>
    %45 = vector.broadcast %6 : vector<1x32xf32> to vector<42x32xf32>
    %46 = arith.mulf %44, %45 : vector<42x32xf32>
    %47 = vector.broadcast %7 : vector<1x32xf32> to vector<42x32xf32>
    %48 = arith.addf %46, %47 : vector<42x32xf32>
    %cst_35 = arith.constant dense<0.000000e+00> : vector<42x96xf32>
    %49 = tpu.matmul %48, %1, %cst_35 {dimension_numbers = #tpu.dot_dimension_numbers<[1], [0], [0], [1], [0, 0, 1, 1], [], []>} : vector<42x32xf32>, vector<32x96xf32>, vector<42x96xf32> -> vector<42x96xf32>
    %50 = vector.broadcast %4 : vector<1x96xf32> to vector<42x96xf32>
    %51 = arith.addf %49, %50 : vector<42x96xf32>
    %52 = vector.extract_strided_slice %51 {offsets = [0, 0], sizes = [21, 16], strides = [1, 1]} : vector<42x96xf32> to vector<21x16xf32>
    %53 = vector.extract_strided_slice %51 {offsets = [0, 32], sizes = [21, 16], strides = [1, 1]} : vector<42x96xf32> to vector<21x16xf32>
    %54 = vector.extract_strided_slice %51 {offsets = [0, 64], sizes = [21, 16], strides = [1, 1]} : vector<42x96xf32> to vector<21x16xf32>
    %cst_36 = arith.constant dense<0.000000e+00> : vector<21x21xf32>
    %55 = tpu.matmul %52, %53, %cst_36 {dimension_numbers = #tpu.dot_dimension_numbers<[1], [1], [0], [0], [0, 0, 1, 0], [], []>} : vector<21x16xf32>, vector<21x16xf32>, vector<21x21xf32> -> vector<21x21xf32>
    %cst_37 = arith.constant dense<0xFF800000> : vector<21xf32>
    %56 = vector.multi_reduction <maximumf>, %55, %cst_37 [1] : vector<21x21xf32> to vector<21xf32>
    %57 = vector.shape_cast %56 : vector<21xf32> to vector<21x1xf32>
    %58 = vector.broadcast %57 : vector<21x1xf32> to vector<21x21xf32>
    %59 = arith.subf %55, %58 : vector<21x21xf32>
    %60 = math.exp %59 : vector<21x21xf32>
    %cst_38 = arith.constant dense<0.000000e+00> : vector<21xf32>
    %61 = vector.multi_reduction <add>, %60, %cst_38 [1] : vector<21x21xf32> to vector<21xf32>
    %62 = vector.shape_cast %61 : vector<21xf32> to vector<21x1xf32>
    %63 = tpu.reciprocal %62 {approx = true} : vector<21x1xf32> -> vector<21x1xf32>
    %cst_39 = arith.constant 0.176776692 : f32
    %64 = vector.broadcast %cst_39 : f32 to vector<21x1xf32>
    %65 = arith.mulf %63, %64 : vector<21x1xf32>
    %66 = vector.broadcast %65 : vector<21x1xf32> to vector<21x21xf32>
    %67 = arith.mulf %60, %66 : vector<21x21xf32>
    %cst_40 = arith.constant dense<0.000000e+00> : vector<21x16xf32>
    %68 = tpu.matmul %67, %54, %cst_40 {dimension_numbers = #tpu.dot_dimension_numbers<[1], [0], [0], [1], [0, 0, 1, 1], [], []>} : vector<21x21xf32>, vector<21x16xf32>, vector<21x16xf32> -> vector<21x16xf32>
    %c0_41 = arith.constant 0 : index
    %c0_42 = arith.constant 0 : index
    %69 = vector.load %arg7[%c0_41, %c0_42] : memref<42x32xf32, #tpu.memory_space<vmem>>, vector<21x16xf32>
    tpu.vector_store %arg7[%c0_41, %c0_42], %68 {strides = array<i32>} : memref<42x32xf32, #tpu.memory_space<vmem>>, vector<21x16xf32>,
    %70 = vector.extract_strided_slice %51 {offsets = [0, 16], sizes = [21, 16], strides = [1, 1]} : vector<42x96xf32> to vector<21x16xf32>
    %71 = vector.extract_strided_slice %51 {offsets = [0, 48], sizes = [21, 16], strides = [1, 1]} : vector<42x96xf32> to vector<21x16xf32>
    %72 = vector.extract_strided_slice %51 {offsets = [0, 80], sizes = [21, 16], strides = [1, 1]} : vector<42x96xf32> to vector<21x16xf32>
    %cst_43 = arith.constant dense<0.000000e+00> : vector<21x21xf32>
    %73 = tpu.matmul %70, %71, %cst_43 {dimension_numbers = #tpu.dot_dimension_numbers<[1], [1], [0], [0], [0, 0, 1, 0], [], []>} : vector<21x16xf32>, vector<21x16xf32>, vector<21x21xf32> -> vector<21x21xf32>
    %cst_44 = arith.constant dense<0xFF800000> : vector<21xf32>
    %74 = vector.multi_reduction <maximumf>, %73, %cst_44 [1] : vector<21x21xf32> to vector<21xf32>
    %75 = vector.shape_cast %74 : vector<21xf32> to vector<21x1xf32>
    %76 = vector.broadcast %75 : vector<21x1xf32> to vector<21x21xf32>
    %77 = arith.subf %73, %76 : vector<21x21xf32>
    %78 = math.exp %77 : vector<21x21xf32>
    %cst_45 = arith.constant dense<0.000000e+00> : vector<21xf32>
    %79 = vector.multi_reduction <add>, %78, %cst_45 [1] : vector<21x21xf32> to vector<21xf32>
    %80 = vector.shape_cast %79 : vector<21xf32> to vector<21x1xf32>
    %81 = tpu.reciprocal %80 {approx = true} : vector<21x1xf32> -> vector<21x1xf32>
    %cst_46 = arith.constant 0.176776692 : f32
    %82 = vector.broadcast %cst_46 : f32 to vector<21x1xf32>
    %83 = arith.mulf %81, %82 : vector<21x1xf32>
    %84 = vector.broadcast %83 : vector<21x1xf32> to vector<21x21xf32>
    %85 = arith.mulf %78, %84 : vector<21x21xf32>
    %cst_47 = arith.constant dense<0.000000e+00> : vector<21x16xf32>
    %86 = tpu.matmul %85, %72, %cst_47 {dimension_numbers = #tpu.dot_dimension_numbers<[1], [0], [0], [1], [0, 0, 1, 1], [], []>} : vector<21x21xf32>, vector<21x16xf32>, vector<21x16xf32> -> vector<21x16xf32>
    %c0_48 = arith.constant 0 : index
    %c16_49 = arith.constant 16 : index
    %87 = vector.load %arg7[%c0_48, %c16_49] : memref<42x32xf32, #tpu.memory_space<vmem>>, vector<21x16xf32>
    tpu.vector_store %arg7[%c0_48, %c16_49], %86 {strides = array<i32>} : memref<42x32xf32, #tpu.memory_space<vmem>>, vector<21x16xf32>,
    %88 = vector.extract_strided_slice %51 {offsets = [21, 0], sizes = [21, 16], strides = [1, 1]} : vector<42x96xf32> to vector<21x16xf32>
    %89 = vector.extract_strided_slice %51 {offsets = [21, 32], sizes = [21, 16], strides = [1, 1]} : vector<42x96xf32> to vector<21x16xf32>
    %90 = vector.extract_strided_slice %51 {offsets = [21, 64], sizes = [21, 16], strides = [1, 1]} : vector<42x96xf32> to vector<21x16xf32>
    %cst_50 = arith.constant dense<0.000000e+00> : vector<21x21xf32>
    %91 = tpu.matmul %88, %89, %cst_50 {dimension_numbers = #tpu.dot_dimension_numbers<[1], [1], [0], [0], [0, 0, 1, 0], [], []>} : vector<21x16xf32>, vector<21x16xf32>, vector<21x21xf32> -> vector<21x21xf32>
    %cst_51 = arith.constant dense<0xFF800000> : vector<21xf32>
    %92 = vector.multi_reduction <maximumf>, %91, %cst_51 [1] : vector<21x21xf32> to vector<21xf32>
    %93 = vector.shape_cast %92 : vector<21xf32> to vector<21x1xf32>
    %94 = vector.broadcast %93 : vector<21x1xf32> to vector<21x21xf32>
    %95 = arith.subf %91, %94 : vector<21x21xf32>
    %96 = math.exp %95 : vector<21x21xf32>
    %cst_52 = arith.constant dense<0.000000e+00> : vector<21xf32>
    %97 = vector.multi_reduction <add>, %96, %cst_52 [1] : vector<21x21xf32> to vector<21xf32>
    %98 = vector.shape_cast %97 : vector<21xf32> to vector<21x1xf32>
    %99 = tpu.reciprocal %98 {approx = true} : vector<21x1xf32> -> vector<21x1xf32>
    %cst_53 = arith.constant 0.176776692 : f32
    %100 = vector.broadcast %cst_53 : f32 to vector<21x1xf32>
    %101 = arith.mulf %99, %100 : vector<21x1xf32>
    %102 = vector.broadcast %101 : vector<21x1xf32> to vector<21x21xf32>
    %103 = arith.mulf %96, %102 : vector<21x21xf32>
    %cst_54 = arith.constant dense<0.000000e+00> : vector<21x16xf32>
    %104 = tpu.matmul %103, %90, %cst_54 {dimension_numbers = #tpu.dot_dimension_numbers<[1], [0], [0], [1], [0, 0, 1, 1], [], []>} : vector<21x21xf32>, vector<21x16xf32>, vector<21x16xf32> -> vector<21x16xf32>
    %c21_55 = arith.constant 21 : index
    %c0_56 = arith.constant 0 : index
    %105 = vector.load %arg7[%c21_55, %c0_56] : memref<42x32xf32, #tpu.memory_space<vmem>>, vector<21x16xf32>
    tpu.vector_store %arg7[%c21_55, %c0_56], %104 {strides = array<i32>} : memref<42x32xf32, #tpu.memory_space<vmem>>, vector<21x16xf32>,
    %106 = vector.extract_strided_slice %51 {offsets = [21, 16], sizes = [21, 16], strides = [1, 1]} : vector<42x96xf32> to vector<21x16xf32>
    %107 = vector.extract_strided_slice %51 {offsets = [21, 48], sizes = [21, 16], strides = [1, 1]} : vector<42x96xf32> to vector<21x16xf32>
    %108 = vector.extract_strided_slice %51 {offsets = [21, 80], sizes = [21, 16], strides = [1, 1]} : vector<42x96xf32> to vector<21x16xf32>
    %cst_57 = arith.constant dense<0.000000e+00> : vector<21x21xf32>
    %109 = tpu.matmul %106, %107, %cst_57 {dimension_numbers = #tpu.dot_dimension_numbers<[1], [1], [0], [0], [0, 0, 1, 0], [], []>} : vector<21x16xf32>, vector<21x16xf32>, vector<21x21xf32> -> vector<21x21xf32>
    %cst_58 = arith.constant dense<0xFF800000> : vector<21xf32>
    %110 = vector.multi_reduction <maximumf>, %109, %cst_58 [1] : vector<21x21xf32> to vector<21xf32>
    %111 = vector.shape_cast %110 : vector<21xf32> to vector<21x1xf32>
    %112 = vector.broadcast %111 : vector<21x1xf32> to vector<21x21xf32>
    %113 = arith.subf %109, %112 : vector<21x21xf32>
    %114 = math.exp %113 : vector<21x21xf32>
    %cst_59 = arith.constant dense<0.000000e+00> : vector<21xf32>
    %115 = vector.multi_reduction <add>, %114, %cst_59 [1] : vector<21x21xf32> to vector<21xf32>
    %116 = vector.shape_cast %115 : vector<21xf32> to vector<21x1xf32>
    %117 = tpu.reciprocal %116 {approx = true} : vector<21x1xf32> -> vector<21x1xf32>
    %cst_60 = arith.constant 0.176776692 : f32
    %118 = vector.broadcast %cst_60 : f32 to vector<21x1xf32>
    %119 = arith.mulf %117, %118 : vector<21x1xf32>
    %120 = vector.broadcast %119 : vector<21x1xf32> to vector<21x21xf32>
    %121 = arith.mulf %114, %120 : vector<21x21xf32>
    %cst_61 = arith.constant dense<0.000000e+00> : vector<21x16xf32>
    %122 = tpu.matmul %121, %108, %cst_61 {dimension_numbers = #tpu.dot_dimension_numbers<[1], [0], [0], [1], [0, 0, 1, 1], [], []>} : vector<21x21xf32>, vector<21x16xf32>, vector<21x16xf32> -> vector<21x16xf32>
    %c21_62 = arith.constant 21 : index
    %c16_63 = arith.constant 16 : index
    %123 = vector.load %arg7[%c21_62, %c16_63] : memref<42x32xf32, #tpu.memory_space<vmem>>, vector<21x16xf32>
    tpu.vector_store %arg7[%c21_62, %c16_63], %122 {strides = array<i32>} : memref<42x32xf32, #tpu.memory_space<vmem>>, vector<21x16xf32>,
    %c0_64 = arith.constant 0 : index
    %c0_65 = arith.constant 0 : index
    %124 = vector.load %arg7[%c0_64, %c0_65] : memref<42x32xf32, #tpu.memory_space<vmem>>, vector<42x32xf32>
    %cst_66 = arith.constant dense<0.000000e+00> : vector<42x32xf32>
    %125 = tpu.matmul %124, %2, %cst_66 {dimension_numbers = #tpu.dot_dimension_numbers<[1], [0], [0], [1], [0, 0, 1, 1], [], []>} : vector<42x32xf32>, vector<32x32xf32>, vector<42x32xf32> -> vector<42x32xf32>
    %126 = vector.broadcast %8 : vector<1x32xf32> to vector<42x32xf32>
    %127 = arith.addf %125, %126 : vector<42x32xf32>
    %cst_67 = arith.constant dense<0.000000e+00> : vector<42xf32>
    %128 = vector.multi_reduction <add>, %127, %cst_67 [1] : vector<42x32xf32> to vector<42xf32>
    %129 = vector.shape_cast %128 : vector<42xf32> to vector<42x1xf32>
    %cst_68 = arith.constant 3.200000e+01 : f32
    %130 = vector.broadcast %cst_68 : f32 to vector<42x1xf32>
    %131 = arith.divf %129, %130 : vector<42x1xf32>
    %132 = vector.broadcast %131 : vector<42x1xf32> to vector<42x32xf32>
    %133 = arith.subf %127, %132 : vector<42x32xf32>
    %134 = arith.mulf %133, %133 : vector<42x32xf32>
    %cst_69 = arith.constant dense<0.000000e+00> : vector<42xf32>
    %135 = vector.multi_reduction <add>, %134, %cst_69 [1] : vector<42x32xf32> to vector<42xf32>
    %136 = vector.shape_cast %135 : vector<42xf32> to vector<42x1xf32>
    %cst_70 = arith.constant 3.200000e+01 : f32
    %137 = vector.broadcast %cst_70 : f32 to vector<42x1xf32>
    %138 = arith.divf %136, %137 : vector<42x1xf32>
    %139 = vector.broadcast %131 : vector<42x1xf32> to vector<42x32xf32>
    %140 = arith.subf %127, %139 : vector<42x32xf32>
    %cst_71 = arith.constant 9.99999974E-6 : f32
    %141 = vector.broadcast %cst_71 : f32 to vector<42x1xf32>
    %142 = arith.addf %138, %141 : vector<42x1xf32>
    %143 = math.rsqrt %142 : vector<42x1xf32>
    %144 = vector.broadcast %143 : vector<42x1xf32> to vector<42x32xf32>
    %145 = arith.mulf %140, %144 : vector<42x32xf32>
    %146 = vector.broadcast %9 : vector<1x32xf32> to vector<42x32xf32>
    %147 = arith.mulf %145, %146 : vector<42x32xf32>
    %148 = vector.broadcast %10 : vector<1x32xf32> to vector<42x32xf32>
    %149 = arith.addf %147, %148 : vector<42x32xf32>
    %150 = arith.addf %149, %26 : vector<42x32xf32>
    %151 = vector.extract_strided_slice %150 {offsets = [0, 0], sizes = [21, 32], strides = [1, 1]} : vector<42x32xf32> to vector<21x32xf32>
    %cst_72 = arith.constant dense<0.000000e+00> : vector<32xf32>
    %152 = vector.multi_reduction <add>, %151, %cst_72 [0] : vector<21x32xf32> to vector<32xf32>
    %153 = vector.shape_cast %152 : vector<32xf32> to vector<1x32xf32>
    %cst_73 = arith.constant 2.100000e+01 : f32
    %154 = vector.broadcast %cst_73 : f32 to vector<1x32xf32>
    %155 = arith.divf %153, %154 : vector<1x32xf32>
    %c0_74 = arith.constant 0 : index
    %c0_75 = arith.constant 0 : index
    %156 = vector.load %arg8[%c0_74, %c0_75] : memref<2x32xf32, #tpu.memory_space<vmem>>, vector<1x32xf32>
    tpu.vector_store %arg8[%c0_74, %c0_75], %155 {strides = array<i32>} : memref<2x32xf32, #tpu.memory_space<vmem>>, vector<1x32xf32>,
    %157 = vector.extract_strided_slice %150 {offsets = [21, 0], sizes = [21, 32], strides = [1, 1]} : vector<42x32xf32> to vector<21x32xf32>
    %cst_76 = arith.constant dense<0.000000e+00> : vector<32xf32>
    %158 = vector.multi_reduction <add>, %157, %cst_76 [0] : vector<21x32xf32> to vector<32xf32>
    %159 = vector.shape_cast %158 : vector<32xf32> to vector<1x32xf32>
    %cst_77 = arith.constant 2.100000e+01 : f32
    %160 = vector.broadcast %cst_77 : f32 to vector<1x32xf32>
    %161 = arith.divf %159, %160 : vector<1x32xf32>
    %c1_78 = arith.constant 1 : index
    %c0_79 = arith.constant 0 : index
    %162 = vector.load %arg8[%c1_78, %c0_79] : memref<2x32xf32, #tpu.memory_space<vmem>>, vector<1x32xf32>
    tpu.vector_store %arg8[%c1_78, %c0_79], %161 {strides = array<i32>} : memref<2x32xf32, #tpu.memory_space<vmem>>, vector<1x32xf32>,
    %c0_80 = arith.constant 0 : index
    %c0_81 = arith.constant 0 : index
    %163 = vector.load %arg8[%c0_80, %c0_81] : memref<2x32xf32, #tpu.memory_space<vmem>>, vector<2x32xf32>
    %cst_82 = arith.constant dense<0.000000e+00> : vector<2xf32>
    %164 = vector.multi_reduction <add>, %163, %cst_82 [1] : vector<2x32xf32> to vector<2xf32>
    %165 = vector.shape_cast %164 : vector<2xf32> to vector<2x1xf32>
    %cst_83 = arith.constant 3.200000e+01 : f32
    %166 = vector.broadcast %cst_83 : f32 to vector<2x1xf32>
    %167 = arith.divf %165, %166 : vector<2x1xf32>
    %168 = vector.broadcast %167 : vector<2x1xf32> to vector<2x32xf32>
    %169 = arith.subf %163, %168 : vector<2x32xf32>
    %170 = arith.mulf %169, %169 : vector<2x32xf32>
    %cst_84 = arith.constant dense<0.000000e+00> : vector<2xf32>
    %171 = vector.multi_reduction <add>, %170, %cst_84 [1] : vector<2x32xf32> to vector<2xf32>
    %172 = vector.shape_cast %171 : vector<2xf32> to vector<2x1xf32>
    %cst_85 = arith.constant 3.200000e+01 : f32
    %173 = vector.broadcast %cst_85 : f32 to vector<2x1xf32>
    %174 = arith.divf %172, %173 : vector<2x1xf32>
    %175 = vector.broadcast %167 : vector<2x1xf32> to vector<2x32xf32>
    %176 = arith.subf %163, %175 : vector<2x32xf32>
    %cst_86 = arith.constant 9.99999974E-6 : f32
    %177 = vector.broadcast %cst_86 : f32 to vector<2x1xf32>
    %178 = arith.addf %174, %177 : vector<2x1xf32>
    %179 = math.rsqrt %178 : vector<2x1xf32>
    %180 = vector.broadcast %179 : vector<2x1xf32> to vector<2x32xf32>
    %181 = arith.mulf %176, %180 : vector<2x32xf32>
    %182 = vector.broadcast %11 : vector<1x32xf32> to vector<2x32xf32>
    %183 = arith.mulf %181, %182 : vector<2x32xf32>
    %184 = vector.broadcast %12 : vector<1x32xf32> to vector<2x32xf32>
    %185 = arith.addf %183, %184 : vector<2x32xf32>
    %cst_87 = arith.constant dense<0.000000e+00> : vector<2x32xf32>
    %186 = tpu.matmul %185, %3, %cst_87 {dimension_numbers = #tpu.dot_dimension_numbers<[1], [0], [0], [1], [0, 0, 1, 1], [], []>} : vector<2x32xf32>, vector<32x32xf32>, vector<2x32xf32> -> vector<2x32xf32>
    %187 = vector.broadcast %13 : vector<1x32xf32> to vector<2x32xf32>
    %188 = arith.addf %186, %187 : vector<2x32xf32>
    %c0_88 = arith.constant 0 : index
    %c0_89 = arith.constant 0 : index
    %189 = vector.load %arg5[%c0_88, %c0_89] : memref<2x32xf32, #tpu.memory_space<vmem>>, vector<2x32xf32>
    tpu.vector_store %arg5[%c0_88, %c0_89], %188 {strides = array<i32>} : memref<2x32xf32, #tpu.memory_space<vmem>>, vector<2x32xf32>,
    return
  }
}

</mosaic_0001>

<llo_original>
// kernel: model_forward.1
$region0: #{model_forward.1}
  #allocation0 [shape = 'u32[]', space=smem, size = 0x4, offset = 0x4, fixed_abs, tag = 'smem constant byte address 0x4 - core index']
  #allocation1 [shape = 'u32[144,128]{1,0:T(1,128)}', space=vmem, size = 0x12000, scoped, tag = 'internal scratch']
  #allocation2 [shape = 'f32[42,32]{1,0:T(8,128)}', space=vmem, size = 0x6000, scoped, tag = 'scratch operand']
  #allocation3 [shape = 'f32[42,32]{1,0:T(8,128)}', space=vmem, size = 0x6000, scoped, tag = 'scratch operand']
  #allocation4 [shape = 'f32[2,32]{1,0:T(2,128)}', space=vmem, size = 0x400, scoped, tag = 'scratch operand']
  %s0 = inlined_call_operand.vmem [shape: f32[32,16], index: 0, kind: input, shape index: {}]
  %s1 = inlined_call_operand.vmem [shape: f32[10,32], index: 1, kind: input, shape index: {}]
  %s2 = inlined_call_operand.vmem [shape: f32[48,96], index: 2, kind: input, shape index: {}]
  %s3 = inlined_call_operand.vmem [shape: f32[64,32], index: 3, kind: input, shape index: {}]
  %s4 = inlined_call_operand.vmem [shape: f32[16,96], index: 4, kind: input, shape index: {}]
  %s5 = inlined_call_operand.hbm [shape: f32[2,32], index: 5, kind: output, shape index: {}]
  %s6 = sld [smem:[#allocation0]]
  $region30: #{model_forward.1} parent=0
    _
  %s8 = ssub.s32 1, %s6
  %s9 = scalar_select 0, %s8, %s6
  $region1: #{model_forward.1} parent=0
    #allocation5 [shape = 'u8[1024]{0}', space=vmem, size = 0x400, scoped, tag = 'output window, operand 0, single buffered']
    #allocation6 [shape = 's32[1]{0}', space=sflag, size = 0x4, scoped, tag = 'scoped memory for model_forward.1']
    %10 = vsyncpa [#allocation6], 0
    // Predicated region
    $region2: #{model_forward.1} parent=1 // pred_check
      _
    $region3: #{model_forward.1} parent=1 // pred_check_branch
      %12 = sbr.rel (0) target = $region5
    $region4: #{model_forward.1} parent=1 // pred_region
      _
    $region5: #{model_forward.1} parent=1 // pred_fallthru
      _
    // Predicated region
    $region6: #{model_forward.1} parent=1 // pred_check
      _
    $region7: #{model_forward.1} parent=1 // pred_check_branch
      %14 = sbr.rel (0) target = $region9
    $region8: #{model_forward.1} parent=1 // pred_region
      _
    $region9: #{model_forward.1} parent=1 // pred_fallthru
      _
    // Predicated region
    $region10: #{model_forward.1} parent=1 // pred_check
      _
    $region11: #{model_forward.1} parent=1 // pred_check_branch
      %16 = sbr.rel (0) target = $region13
    $region12: #{model_forward.1} parent=1 // pred_region
      _
    $region13: #{model_forward.1} parent=1 // pred_fallthru
      _
    // Predicated region
    $region14: #{model_forward.1} parent=1 // pred_check
      _
    $region15: #{model_forward.1} parent=1 // pred_check_branch
      %18 = sbr.rel (0) target = $region17
    $region16: #{model_forward.1} parent=1 // pred_region
      _
    $region17: #{model_forward.1} parent=1 // pred_fallthru
      _
    // Predicated region
    $region18: #{model_forward.1} parent=1 // pred_check
      _
    $region19: #{model_forward.1} parent=1 // pred_check_branch
      %20 = sbr.rel (0) target = $region21
    $region20: #{model_forward.1} parent=1 // pred_region
      _
    $region21: #{model_forward.1} parent=1 // pred_fallthru
      _
    %v21 = vld [vmem:[%s2] sm:$0xff]
    %v22 = vld [vmem:[%s2 + $0x8] sm:$0xff]
    %v23 = vld [vmem:[%s2 + $0x10] sm:$0xff]
    %v24 = vld [vmem:[%s2 + $0x18] sm:$0xff]
    %v25 = vld [vmem:[%s2 + $0x20] sm:$0xff]
    %v26 = vld [vmem:[%s2 + $0x28] sm:$0xff]
    %v27 = vld [vmem:[%s3] sm:$0xff]
    %v28 = vld [vmem:[%s3 + $0x8] sm:$0xff]
    %v29 = vld [vmem:[%s3 + $0x10] sm:$0xff]
    %v30 = vld [vmem:[%s3 + $0x18] sm:$0xff]
    %v31 = vld [vmem:[%s3 + $0x20] sm:$0xff]
    %v32 = vld [vmem:[%s3 + $0x28] sm:$0xff]
    %v33 = vld [vmem:[%s3 + $0x30] sm:$0xff]
    %v34 = vld [vmem:[%s3 + $0x38] sm:$0xff]
    %v35 = vld [vmem:[%s4] sm:$0x1]
    %v36 = vld [vmem:[%s4 + $0x1] sm:$0x1]
    %v37 = vld [vmem:[%s4 + $0x2] sm:$0x1]
    %v38 = vld [vmem:[%s4 + $0x3] sm:$0x1]
    %v39 = vld [vmem:[%s4 + $0x4] sm:$0x1]
    %v40 = vld [vmem:[%s4 + $0x5] sm:$0x1]
    %v41 = vld [vmem:[%s4 + $0x6] sm:$0x1]
    %v42 = vld [vmem:[%s4 + $0x7] sm:$0x1]
    %v43 = vld [vmem:[%s4 + $0x8] sm:$0x1]
    %v44 = vld [vmem:[%s4 + $0x9] sm:$0x1]
    %v45 = vld [vmem:[%s0] sm:$0xff]
    %v46 = vld [vmem:[%s0 + $0x8] sm:$0xff]
    %v47 = vld [vmem:[%s0 + $0x10] sm:$0xff]
    %v48 = vld [vmem:[%s0 + $0x18] sm:$0xff]
    %v49 = vlaneseq
    %v50 = vshrl.u32 %v49, 7
    %v51 = vsub.s32 0, %v50
    %v52 = vrot.slane %v36, %v51
    %vm53 = vcmask 130048
    %v55 = vsel %vm53, %v45, 0
    %v58 = vsel %vm53, %v46, 0
    %v61 = vsel %vm53, %v47, 0
    %v64 = vsel %vm53, %v48, 0
    %66 = vmatprep.subr.mxu0 0.0
    %67 = vmatpush1.msra.mxu0 %v21
    %68 = vmatprep.subr.mxu0 0.0
    %69 = vmatpush1.msra.mxu0 %v22
    %70 = vmatprep.subr.mxu0 0.0
    %71 = vmatpush1.msra.mxu0 0.0
    %72 = vmatprep.subr.mxu0 0.0
    %73 = vmatpush1.msra.mxu0 0.0
    %74 = vmatprep.subr.mxu0 0.0
    %75 = vmatpush1.msra.mxu0 0.0
    %76 = vmatprep.subr.mxu0 0.0
    %77 = vmatpush1.msra.mxu0 0.0
    %78 = vmatprep.subr.mxu0 0.0
    %79 = vmatpush1.msra.mxu0 0.0
    %80 = vmatprep.subr.mxu0 0.0
    %81 = vmatpush1.msra.mxu0 0.0
    %82 = vmatprep.subr.mxu0 0.0
    %83 = vmatpush1.msra.mxu0 0.0
    %84 = vmatprep.subr.mxu0 0.0
    %85 = vmatpush1.msra.mxu0 0.0
    %86 = vmatprep.subr.mxu0 0.0
    %87 = vmatpush1.msra.mxu0 0.0
    %88 = vmatprep.subr.mxu0 0.0
    %89 = vmatpush1.msra.mxu0 0.0
    %90 = vmatprep.subr.mxu0 0.0
    %91 = vmatpush1.msra.mxu0 0.0
    %92 = vmatprep.subr.mxu0 0.0
    %93 = vmatpush1.msra.mxu0 0.0
    %94 = vmatprep.subr.mxu0 0.0
    %95 = vmatpush1.msra.mxu0 0.0
    %96 = vmatprep.subr.mxu0 0.0
    %97 = vmatpush1.msra.mxu0 0.0
    %98 = vmatprep.subr.mxu0 0.0
    %99 = vmatpush1.msra.mxu0 0.0
    %100 = vmatprep.subr.mxu0 0.0
    %101 = vmatpush1.msra.mxu0 0.0
    %102 = vmatprep.subr.mxu0 0.0
    %103 = vmatpush1.msra.mxu0 0.0
    %104 = vmatprep.subr.mxu0 0.0
    %105 = vmatpush1.msra.mxu0 0.0
    %106 = vmatprep.subr.mxu0 0.0
    %107 = vmatpush1.msra.mxu0 0.0
    %108 = vmatprep.subr.mxu0 0.0
    %109 = vmatpush1.msra.mxu0 0.0
    %110 = vmatprep.subr.mxu0 0.0
    %111 = vmatpush1.msra.mxu0 0.0
    %112 = vmatprep.subr.mxu0 0.0
    %113 = vmatpush1.msra.mxu0 0.0
    %114 = vmatprep.subr.mxu0 0.0
    %115 = vmatpush1.msra.mxu0 0.0
    %116 = vmatprep.subr.mxu0 0.0
    %117 = vmatpush1.msra.mxu0 0.0
    %118 = vmatprep.subr.mxu0 0.0
    %119 = vmatpush1.msra.mxu0 0.0
    %120 = vmatprep.subr.mxu0 0.0
    %121 = vmatpush1.msra.mxu0 0.0
    %122 = vmatprep.subr.mxu0 0.0
    %123 = vmatpush1.msra.mxu0 0.0
    %124 = vmatprep.subr.mxu0 0.0
    %125 = vmatpush1.msra.mxu0 0.0
    %126 = vmatprep.subr.mxu0 0.0
    %127 = vmatpush1.msra.mxu0 0.0
    %128 = vmatprep.subr.mxu0 0.0
    %129 = vmatpush1.msra.mxu0 0.0
    %130 = vmatprep.mubr.f32.mxu0 0.0
    %131 = vmatmul.mubr.f32.gmra.mrb[0].mxu0 %v55
    %v132 = vpop.f32.mrb[0].mxu0
    %v133 = vadd.f32 %v52, %v132
    %v134 = vpop.f32.mrb[0].mxu0
    %135 = vmatprep.mubr.f32.mxu0 0.0
    %136 = vmatmul.mubr.f32.gmra.mrb[0].mxu0 %v58
    %v137 = vpop.f32.mrb[0].mxu0
    %v138 = vadd.f32 %v52, %v137
    %v139 = vpop.f32.mrb[0].mxu0
    %140 = vmatprep.mubr.f32.mxu0 0.0
    %141 = vmatmul.mubr.f32.gmra.mrb[0].mxu0 %v61
    %v142 = vpop.f32.mrb[0].mxu0
    %v143 = vadd.f32 %v52, %v142
    %v144 = vpop.f32.mrb[0].mxu0
    %145 = vmatprep.mubr.f32.mxu0 0.0
    %146 = vmatmul.mubr.f32.gmra.mrb[0].mxu0 %v64
    %v147 = vpop.f32.mrb[0].mxu0
    %v148 = vadd.f32 %v52, %v147
    %v149 = vpop.f32.mrb[0].mxu0
    %150 = vdwg.mxu0
    %v151 = vld [vmem:[%s1] sm:$0x1f]
    %vm152 = vcmask 258048
    %153 = vst.msk [vmem:[#allocation2] sm:$0x1f] %vm152, %v151
    %vm154 = vcmask 261120
    %155 = vst.msk [vmem:[#allocation2 + $0x5] sm:$0xff] %vm154, %v133
    %156 = vst.msk [vmem:[#allocation2 + $0xd] sm:$0xff] %vm154, %v138
    %v157 = vld [vmem:[%s1 + $0x5] sm:$0x1f]
    %158 = vst.msk [vmem:[#allocation2 + $0x15] sm:$0x1f] %vm152, %v157
    %159 = vst.msk [vmem:[#allocation2 + $0x1a] sm:$0xff] %vm154, %v143
    %160 = vst.msk [vmem:[#allocation2 + $0x22] sm:$0xff] %vm154, %v148
    %v161 = vld [vmem:[#allocation2] sm:$0xff]
    %v162 = vld [vmem:[#allocation2 + $0x8] sm:$0xff]
    %v163 = vld [vmem:[#allocation2 + $0x10] sm:$0xff]
    %v164 = vld [vmem:[#allocation2 + $0x18] sm:$0xff]
    %v165 = vld [vmem:[#allocation2 + $0x20] sm:$0xff]
    %v166 = vld [vmem:[#allocation2 + $0x28] sm:$0x3]
    %v167 = vsel %vm154, %v161, 0.0
    %168 = vadd.xlane.f32.xlu0 %v167
    %v169 = vpop.xlane.xlu0 %168
    %v170 = vsel %vm154, %v162, 0.0
    %171 = vadd.xlane.f32.xlu0 %v170
    %v172 = vpop.xlane.xlu0 %171
    %v173 = vsel %vm154, %v163, 0.0
    %174 = vadd.xlane.f32.xlu0 %v173
    %v175 = vpop.xlane.xlu0 %174
    %v176 = vsel %vm154, %v164, 0.0
    %177 = vadd.xlane.f32.xlu0 %v176
    %v178 = vpop.xlane.xlu0 %177
    %v179 = vsel %vm154, %v165, 0.0
    %180 = vadd.xlane.f32.xlu0 %v179
    %v181 = vpop.xlane.xlu0 %180
    %vm182 = vcmask 254976
    %v183 = vsel %vm182, %v166, 0.0
    %184 = vadd.xlane.f32.xlu0 %v183
    %v185 = vpop.xlane.xlu0 %184
    %v186 = vrcp.pop 32.0
    %v187 = vmul.f32 %v169, %v186
    %v188 = vmul.f32 %v172, %v186
    %v189 = vmul.f32 %v175, %v186
    %v190 = vmul.f32 %v178, %v186
    %v191 = vmul.f32 %v181, %v186
    %v192 = vmul.f32 %v185, %v186
    %v193 = vsub.f32 %v161, %v187
    %v194 = vsub.f32 %v162, %v188
    %v195 = vsub.f32 %v163, %v189
    %v196 = vsub.f32 %v164, %v190
    %v197 = vsub.f32 %v165, %v191
    %v198 = vsub.f32 %v166, %v192
    %v199 = vmul.f32 %v193, %v193
    %v200 = vmul.f32 %v194, %v194
    %v201 = vmul.f32 %v195, %v195
    %v202 = vmul.f32 %v196, %v196
    %v203 = vmul.f32 %v197, %v197
    %v204 = vmul.f32 %v198, %v198
    %v205 = vsel %vm154, %v199, 0.0
    %206 = vadd.xlane.f32.xlu0 %v205
    %v207 = vpop.xlane.xlu0 %206
    %v208 = vsel %vm154, %v200, 0.0
    %209 = vadd.xlane.f32.xlu0 %v208
    %v210 = vpop.xlane.xlu0 %209
    %v211 = vsel %vm154, %v201, 0.0
    %212 = vadd.xlane.f32.xlu0 %v211
    %v213 = vpop.xlane.xlu0 %212
    %v214 = vsel %vm154, %v202, 0.0
    %215 = vadd.xlane.f32.xlu0 %v214
    %v216 = vpop.xlane.xlu0 %215
    %v217 = vsel %vm154, %v203, 0.0
    %218 = vadd.xlane.f32.xlu0 %v217
    %v219 = vpop.xlane.xlu0 %218
    %v220 = vsel %vm182, %v204, 0.0
    %221 = vadd.xlane.f32.xlu0 %v220
    %v222 = vpop.xlane.xlu0 %221
    %v223 = vmul.f32 %v207, %v186
    %v224 = vmul.f32 %v210, %v186
    %v225 = vmul.f32 %v213, %v186
    %v226 = vmul.f32 %v216, %v186
    %v227 = vmul.f32 %v219, %v186
    %v228 = vmul.f32 %v222, %v186
    %v229 = vadd.f32 %v223, 1e-05
    %v230 = vadd.f32 %v224, 1e-05
    %v231 = vadd.f32 %v225, 1e-05
    %v232 = vadd.f32 %v226, 1e-05
    %v233 = vadd.f32 %v227, 1e-05
    %v234 = vadd.f32 %v228, 1e-05
    %v235 = vrsqrt.pop %v229
    %v236 = vrsqrt.pop %v230
    %v237 = vrsqrt.pop %v231
    %v238 = vrsqrt.pop %v232
    %v239 = vrsqrt.pop %v233
    %v240 = vrsqrt.pop %v234
    %v241 = vmul.f32 %v193, %v235
    %v242 = vmul.f32 %v194, %v236
    %v243 = vmul.f32 %v195, %v237
    %v244 = vmul.f32 %v196, %v238
    %v245 = vmul.f32 %v197, %v239
    %v246 = vmul.f32 %v198, %v240
    %v247 = vlaneseq
    %v248 = vshrl.u32 %v247, 7
    %v249 = vsub.s32 0, %v248
    %v250 = vrot.slane %v37, %v249
    %v251 = vmul.f32 %v241, %v250
    %v252 = vmul.f32 %v242, %v250
    %v253 = vmul.f32 %v243, %v250
    %v254 = vmul.f32 %v244, %v250
    %v255 = vmul.f32 %v245, %v250
    %v256 = vmul.f32 %v246, %v250
    %v257 = vlaneseq
    %v258 = vshrl.u32 %v257, 7
    %v259 = vsub.s32 0, %v258
    %v260 = vrot.slane %v38, %v259
    %v261 = vadd.f32 %v251, %v260
    %v262 = vadd.f32 %v252, %v260
    %v263 = vadd.f32 %v253, %v260
    %v264 = vadd.f32 %v254, %v260
    %v265 = vadd.f32 %v255, %v260
    %v266 = vadd.f32 %v256, %v260
    %v267 = vlaneseq
    %v268 = vshrl.u32 %v267, 7
    %v269 = vsub.s32 0, %v268
    %v270 = vrot.slane %v35, %v269
    %v272 = vsel %vm154, %v261, 0
    %v275 = vsel %vm154, %v262, 0
    %v278 = vsel %vm154, %v263, 0
    %v281 = vsel %vm154, %v264, 0
    %v284 = vsel %vm154, %v265, 0
    %v287 = vsel %vm154, %v266, 0
    %289 = vmatprep.subr.mxu0 0.0
    %290 = vmatpush1.msra.mxu0 %v23
    %291 = vmatprep.subr.mxu0 0.0
    %292 = vmatpush1.msra.mxu0 %v24
    %293 = vmatprep.subr.mxu0 0.0
    %294 = vmatpush1.msra.mxu0 %v25
    %295 = vmatprep.subr.mxu0 0.0
    %296 = vmatpush1.msra.mxu0 %v26
    %297 = vmatprep.subr.mxu0 0.0
    %298 = vmatpush1.msra.mxu0 0.0
    %299 = vmatprep.subr.mxu0 0.0
    %300 = vmatpush1.msra.mxu0 0.0
    %301 = vmatprep.subr.mxu0 0.0
    %302 = vmatpush1.msra.mxu0 0.0
    %303 = vmatprep.subr.mxu0 0.0
    %304 = vmatpush1.msra.mxu0 0.0
    %305 = vmatprep.subr.mxu0 0.0
    %306 = vmatpush1.msra.mxu0 0.0
    %307 = vmatprep.subr.mxu0 0.0
    %308 = vmatpush1.msra.mxu0 0.0
    %309 = vmatprep.subr.mxu0 0.0
    %310 = vmatpush1.msra.mxu0 0.0
    %311 = vmatprep.subr.mxu0 0.0
    %312 = vmatpush1.msra.mxu0 0.0
    %313 = vmatprep.subr.mxu0 0.0
    %314 = vmatpush1.msra.mxu0 0.0
    %315 = vmatprep.subr.mxu0 0.0
    %316 = vmatpush1.msra.mxu0 0.0
    %317 = vmatprep.subr.mxu0 0.0
    %318 = vmatpush1.msra.mxu0 0.0
    %319 = vmatprep.subr.mxu0 0.0
    %320 = vmatpush1.msra.mxu0 0.0
    %321 = vmatprep.subr.mxu0 0.0
    %322 = vmatpush1.msra.mxu0 0.0
    %323 = vmatprep.subr.mxu0 0.0
    %324 = vmatpush1.msra.mxu0 0.0
    %325 = vmatprep.subr.mxu0 0.0
    %326 = vmatpush1.msra.mxu0 0.0
    %327 = vmatprep.subr.mxu0 0.0
    %328 = vmatpush1.msra.mxu0 0.0
    %329 = vmatprep.subr.mxu0 0.0
    %330 = vmatpush1.msra.mxu0 0.0
    %331 = vmatprep.subr.mxu0 0.0
    %332 = vmatpush1.msra.mxu0 0.0
    %333 = vmatprep.subr.mxu0 0.0
    %334 = vmatpush1.msra.mxu0 0.0
    %335 = vmatprep.subr.mxu0 0.0
    %336 = vmatpush1.msra.mxu0 0.0
    %337 = vmatprep.subr.mxu0 0.0
    %338 = vmatpush1.msra.mxu0 0.0
    %339 = vmatprep.subr.mxu0 0.0
    %340 = vmatpush1.msra.mxu0 0.0
    %341 = vmatprep.subr.mxu0 0.0
    %342 = vmatpush1.msra.mxu0 0.0
    %343 = vmatprep.subr.mxu0 0.0
    %344 = vmatpush1.msra.mxu0 0.0
    %345 = vmatprep.subr.mxu0 0.0
    %346 = vmatpush1.msra.mxu0 0.0
    %347 = vmatprep.subr.mxu0 0.0
    %348 = vmatpush1.msra.mxu0 0.0
    %349 = vmatprep.subr.mxu0 0.0
    %350 = vmatpush1.msra.mxu0 0.0
    %351 = vmatprep.subr.mxu0 0.0
    %352 = vmatpush1.msra.mxu0 0.0
    %353 = vmatprep.mubr.f32.mxu0 0.0
    %354 = vmatmul.mubr.f32.gmra.mrb[0].mxu0 %v272
    %v355 = vpop.f32.mrb[0].mxu0
    %v356 = vadd.f32 %v270, %v355
    %v357 = vpop.f32.mrb[0].mxu0
    %358 = vmatprep.mubr.f32.mxu0 0.0
    %359 = vmatmul.mubr.f32.gmra.mrb[0].mxu0 %v275
    %v360 = vpop.f32.mrb[0].mxu0
    %v361 = vadd.f32 %v270, %v360
    %v362 = vpop.f32.mrb[0].mxu0
    %363 = vmatprep.mubr.f32.mxu0 0.0
    %364 = vmatmul.mubr.f32.gmra.mrb[0].mxu0 %v278
    %v365 = vpop.f32.mrb[0].mxu0
    %v366 = vadd.f32 %v270, %v365
    %v367 = vpop.f32.mrb[0].mxu0
    %368 = vmatprep.mubr.f32.mxu0 0.0
    %369 = vmatmul.mubr.f32.gmra.mrb[0].mxu0 %v281
    %v370 = vpop.f32.mrb[0].mxu0
    %v371 = vadd.f32 %v270, %v370
    %v372 = vpop.f32.mrb[0].mxu0
    %373 = vmatprep.mubr.f32.mxu0 0.0
    %374 = vmatmul.mubr.f32.gmra.mrb[0].mxu0 %v284
    %v375 = vpop.f32.mrb[0].mxu0
    %v376 = vadd.f32 %v270, %v375
    %v377 = vpop.f32.mrb[0].mxu0
    %378 = vmatprep.mubr.f32.mxu0 0.0
    %379 = vmatmul.mubr.f32.gmra.mrb[0].mxu0 %v287
    %v380 = vpop.f32.mrb[0].mxu0
    %v381 = vadd.f32 %v270, %v380
    %v382 = vpop.f32.mrb[0].mxu0
    %383 = vdwg.mxu0
    %387 = vrot.lane.b32.xlu0 %v356, 96
    %v388 = vpop.permute.xlu0 %387
    %389 = vrot.lane.b32.xlu0 %v361, 96
    %v390 = vpop.permute.xlu0 %389
    %391 = vrot.lane.b32.xlu0 %v366, 96
    %v392 = vpop.permute.xlu0 %391
    %v393 = vsel %vm53, %v356, 0
    %v395 = vsel %vm53, %v361, 0
    %v397 = vsel %vm53, %v366, 0
    %v399 = vsel %vm53, %v388, 0
    %v401 = vsel %vm53, %v390, 0
    %v403 = vsel %vm53, %v392, 0
    %405 = vmatprep.subr.mxu0 0.0
    %406 = vmatpush1.xpose.msra.mxu0 %v399
    %407 = vmatprep.subr.mxu0 0.0
    %408 = vmatpush1.xpose.msra.mxu0 %v401
    %409 = vmatprep.subr.mxu0 0.0
    %410 = vmatpush1.xpose.msra.mxu0 %v403
    %411 = vmatprep.subr.mxu0 0.0
    %412 = vmatpush1.xpose.msra.mxu0 0.0
    %413 = vmatprep.subr.mxu0 0.0
    %414 = vmatpush1.xpose.msra.mxu0 0.0
    %415 = vmatprep.subr.mxu0 0.0
    %416 = vmatpush1.xpose.msra.mxu0 0.0
    %417 = vmatprep.subr.mxu0 0.0
    %418 = vmatpush1.xpose.msra.mxu0 0.0
    %419 = vmatprep.subr.mxu0 0.0
    %420 = vmatpush1.xpose.msra.mxu0 0.0
    %421 = vmatprep.subr.mxu0 0.0
    %422 = vmatpush1.xpose.msra.mxu0 0.0
    %423 = vmatprep.subr.mxu0 0.0
    %424 = vmatpush1.xpose.msra.mxu0 0.0
    %425 = vmatprep.subr.mxu0 0.0
    %426 = vmatpush1.xpose.msra.mxu0 0.0
    %427 = vmatprep.subr.mxu0 0.0
    %428 = vmatpush1.xpose.msra.mxu0 0.0
    %429 = vmatprep.subr.mxu0 0.0
    %430 = vmatpush1.xpose.msra.mxu0 0.0
    %431 = vmatprep.subr.mxu0 0.0
    %432 = vmatpush1.xpose.msra.mxu0 0.0
    %433 = vmatprep.subr.mxu0 0.0
    %434 = vmatpush1.xpose.msra.mxu0 0.0
    %435 = vmatprep.subr.mxu0 0.0
    %436 = vmatpush1.xpose.msra.mxu0 0.0
    %437 = vmatprep.subr.mxu0 0.0
    %438 = vmatpush1.xpose.msra.mxu0 0.0
    %439 = vmatprep.subr.mxu0 0.0
    %440 = vmatpush1.xpose.msra.mxu0 0.0
    %441 = vmatprep.subr.mxu0 0.0
    %442 = vmatpush1.xpose.msra.mxu0 0.0
    %443 = vmatprep.subr.mxu0 0.0
    %444 = vmatpush1.xpose.msra.mxu0 0.0
    %445 = vmatprep.subr.mxu0 0.0
    %446 = vmatpush1.xpose.msra.mxu0 0.0
    %447 = vmatprep.subr.mxu0 0.0
    %448 = vmatpush1.xpose.msra.mxu0 0.0
    %449 = vmatprep.subr.mxu0 0.0
    %450 = vmatpush1.xpose.msra.mxu0 0.0
    %451 = vmatprep.subr.mxu0 0.0
    %452 = vmatpush1.xpose.msra.mxu0 0.0
    %453 = vmatprep.subr.mxu0 0.0
    %454 = vmatpush1.xpose.msra.mxu0 0.0
    %455 = vmatprep.subr.mxu0 0.0
    %456 = vmatpush1.xpose.msra.mxu0 0.0
    %457 = vmatprep.subr.mxu0 0.0
    %458 = vmatpush1.xpose.msra.mxu0 0.0
    %459 = vmatprep.subr.mxu0 0.0
    %460 = vmatpush1.xpose.msra.mxu0 0.0
    %461 = vmatprep.subr.mxu0 0.0
    %462 = vmatpush1.xpose.msra.mxu0 0.0
    %463 = vmatprep.subr.mxu0 0.0
    %464 = vmatpush1.xpose.msra.mxu0 0.0
    %465 = vmatprep.subr.mxu0 0.0
    %466 = vmatpush1.xpose.msra.mxu0 0.0
    %467 = vmatprep.subr.mxu0 0.0
    %468 = vmatpush1.xpose.msra.mxu0 0.0
    %469 = vmatprep.mubr.f32.mxu0 0.0
    %470 = vmatmul.mubr.f32.gmra.mrb[0].mxu0 %v393
    %v471 = vpop.f32.mrb[0].mxu0
    %v472 = vadd.f32 0.0, %v471
    %v473 = vpop.f32.mrb[0].mxu0
    %474 = vmatprep.mubr.f32.mxu0 0.0
    %475 = vmatmul.mubr.f32.gmra.mrb[0].mxu0 %v395
    %v476 = vpop.f32.mrb[0].mxu0
    %v477 = vadd.f32 0.0, %v476
    %v478 = vpop.f32.mrb[0].mxu0
    %479 = vmatprep.mubr.f32.mxu0 0.0
    %480 = vmatmul.mubr.f32.gmra.mrb[0].mxu0 %v397
    %v481 = vpop.f32.mrb[0].mxu0
    %v482 = vadd.f32 0.0, %v481
    %v483 = vpop.f32.mrb[0].mxu0
    %484 = vdwg.mxu0
    %vm485 = vcmask 171008
    %v486 = vsel %vm485, %v472, -inf
    %487 = vmax.xlane.f32.xlu0 %v486
    %v488 = vpop.xlane.xlu0 %487
    %v489 = vsel %vm485, %v477, -inf
    %490 = vmax.xlane.f32.xlu0 %v489
    %v491 = vpop.xlane.xlu0 %490
    %vm492 = vcmask 167936
    %v493 = vsel %vm492, %v482, -inf
    %494 = vmax.xlane.f32.xlu0 %v493
    %v495 = vpop.xlane.xlu0 %494
    %v496 = vsub.f32 %v472, %v488
    %v497 = vsub.f32 %v477, %v491
    %v498 = vsub.f32 %v482, %v495
    %v499 = vmul.f32 %v496, 1.442695
    %v500 = vpow.pop %v499
    %v501 = vmul.f32 %v497, 1.442695
    %v502 = vpow.pop %v501
    %v503 = vmul.f32 %v498, 1.442695
    %v504 = vpow.pop %v503
    %v505 = vsel %vm485, %v500, 0.0
    %506 = vadd.xlane.f32.xlu0 %v505
    %v507 = vpop.xlane.xlu0 %506
    %v508 = vsel %vm485, %v502, 0.0
    %509 = vadd.xlane.f32.xlu0 %v508
    %v510 = vpop.xlane.xlu0 %509
    %v511 = vsel %vm492, %v504, 0.0
    %512 = vadd.xlane.f32.xlu0 %v511
    %v513 = vpop.xlane.xlu0 %512
    %v514 = vrcp.pop %v507
    %v515 = vrcp.pop %v510
    %v516 = vrcp.pop %v513
    %v517 = vmul.f32 %v514, 0.17677669
    %v518 = vmul.f32 %v515, 0.17677669
    %v519 = vmul.f32 %v516, 0.17677669
    %v520 = vmul.f32 %v500, %v517
    %v521 = vmul.f32 %v502, %v518
    %v522 = vmul.f32 %v504, %v519
    %523 = vrot.lane.b32.xlu0 %v356, 64
    %v524 = vpop.permute.xlu0 %523
    %525 = vrot.lane.b32.xlu0 %v361, 64
    %v526 = vpop.permute.xlu0 %525
    %527 = vrot.lane.b32.xlu0 %v366, 64
    %v528 = vpop.permute.xlu0 %527
    %v532 = vsel %vm485, %v520, 0
    %v535 = vsel %vm485, %v521, 0
    %v538 = vsel %vm485, %v522, 0
    %vm540 = vcmask 1044480
    %v541 = vsel %vm540, %v528, 0
    %543 = vmatprep.subr.mxu0 0.0
    %544 = vmatpush1.msra.mxu0 %v524
    %545 = vmatprep.subr.mxu0 0.0
    %546 = vmatpush1.msra.mxu0 %v526
    %547 = vmatprep.subr.mxu0 0.0
    %548 = vmatpush1.msra.mxu0 %v541
    %549 = vmatprep.subr.mxu0 0.0
    %550 = vmatpush1.msra.mxu0 0.0
    %551 = vmatprep.subr.mxu0 0.0
    %552 = vmatpush1.msra.mxu0 0.0
    %553 = vmatprep.subr.mxu0 0.0
    %554 = vmatpush1.msra.mxu0 0.0
    %555 = vmatprep.subr.mxu0 0.0
    %556 = vmatpush1.msra.mxu0 0.0
    %557 = vmatprep.subr.mxu0 0.0
    %558 = vmatpush1.msra.mxu0 0.0
    %559 = vmatprep.subr.mxu0 0.0
    %560 = vmatpush1.msra.mxu0 0.0
    %561 = vmatprep.subr.mxu0 0.0
    %562 = vmatpush1.msra.mxu0 0.0
    %563 = vmatprep.subr.mxu0 0.0
    %564 = vmatpush1.msra.mxu0 0.0
    %565 = vmatprep.subr.mxu0 0.0
    %566 = vmatpush1.msra.mxu0 0.0
    %567 = vmatprep.subr.mxu0 0.0
    %568 = vmatpush1.msra.mxu0 0.0
    %569 = vmatprep.subr.mxu0 0.0
    %570 = vmatpush1.msra.mxu0 0.0
    %571 = vmatprep.subr.mxu0 0.0
    %572 = vmatpush1.msra.mxu0 0.0
    %573 = vmatprep.subr.mxu0 0.0
    %574 = vmatpush1.msra.mxu0 0.0
    %575 = vmatprep.subr.mxu0 0.0
    %576 = vmatpush1.msra.mxu0 0.0
    %577 = vmatprep.subr.mxu0 0.0
    %578 = vmatpush1.msra.mxu0 0.0
    %579 = vmatprep.subr.mxu0 0.0
    %580 = vmatpush1.msra.mxu0 0.0
    %581 = vmatprep.subr.mxu0 0.0
    %582 = vmatpush1.msra.mxu0 0.0
    %583 = vmatprep.subr.mxu0 0.0
    %584 = vmatpush1.msra.mxu0 0.0
    %585 = vmatprep.subr.mxu0 0.0
    %586 = vmatpush1.msra.mxu0 0.0
    %587 = vmatprep.subr.mxu0 0.0
    %588 = vmatpush1.msra.mxu0 0.0
    %589 = vmatprep.subr.mxu0 0.0
    %590 = vmatpush1.msra.mxu0 0.0
    %591 = vmatprep.subr.mxu0 0.0
    %592 = vmatpush1.msra.mxu0 0.0
    %593 = vmatprep.subr.mxu0 0.0
    %594 = vmatpush1.msra.mxu0 0.0
    %595 = vmatprep.subr.mxu0 0.0
    %596 = vmatpush1.msra.mxu0 0.0
    %597 = vmatprep.subr.mxu0 0.0
    %598 = vmatpush1.msra.mxu0 0.0
    %599 = vmatprep.subr.mxu0 0.0
    %600 = vmatpush1.msra.mxu0 0.0
    %601 = vmatprep.subr.mxu0 0.0
    %602 = vmatpush1.msra.mxu0 0.0
    %603 = vmatprep.subr.mxu0 0.0
    %604 = vmatpush1.msra.mxu0 0.0
    %605 = vmatprep.subr.mxu0 0.0
    %606 = vmatpush1.msra.mxu0 0.0
    %607 = vmatprep.mubr.f32.mxu0 0.0
    %608 = vmatmul.mubr.f32.gmra.mrb[0].mxu0 %v532
    %v609 = vpop.f32.mrb[0].mxu0
    %v610 = vadd.f32 0.0, %v609
    %v611 = vpop.f32.mrb[0].mxu0
    %612 = vmatprep.mubr.f32.mxu0 0.0
    %613 = vmatmul.mubr.f32.gmra.mrb[0].mxu0 %v535
    %v614 = vpop.f32.mrb[0].mxu0
    %v615 = vadd.f32 0.0, %v614
    %v616 = vpop.f32.mrb[0].mxu0
    %617 = vmatprep.mubr.f32.mxu0 0.0
    %618 = vmatmul.mubr.f32.gmra.mrb[0].mxu0 %v538
    %v619 = vpop.f32.mrb[0].mxu0
    %v620 = vadd.f32 0.0, %v619
    %v621 = vpop.f32.mrb[0].mxu0
    %622 = vdwg.mxu0
    %623 = vst.msk [vmem:[#allocation3] sm:$0xff] %vm53, %v610
    %624 = vst.msk [vmem:[#allocation3 + $0x8] sm:$0xff] %vm53, %v615
    %vm625 = vcmask 126976
    %626 = vst.msk [vmem:[#allocation3 + $0x10] sm:$0x1f] %vm625, %v620
    %627 = vrot.lane.b32.xlu0 %v356, 112
    %v628 = vpop.permute.xlu0 %627
    %629 = vrot.lane.b32.xlu0 %v361, 112
    %v630 = vpop.permute.xlu0 %629
    %631 = vrot.lane.b32.xlu0 %v366, 112
    %v632 = vpop.permute.xlu0 %631
    %633 = vrot.lane.b32.xlu0 %v356, 80
    %v634 = vpop.permute.xlu0 %633
    %635 = vrot.lane.b32.xlu0 %v361, 80
    %v636 = vpop.permute.xlu0 %635
    %637 = vrot.lane.b32.xlu0 %v366, 80
    %v638 = vpop.permute.xlu0 %637
    %v639 = vsel %vm53, %v628, 0
    %v641 = vsel %vm53, %v630, 0
    %v643 = vsel %vm53, %v632, 0
    %v645 = vsel %vm53, %v634, 0
    %v647 = vsel %vm53, %v636, 0
    %v649 = vsel %vm53, %v638, 0
    %651 = vmatprep.subr.mxu0 0.0
    %652 = vmatpush1.xpose.msra.mxu0 %v645
    %653 = vmatprep.subr.mxu0 0.0
    %654 = vmatpush1.xpose.msra.mxu0 %v647
    %655 = vmatprep.subr.mxu0 0.0
    %656 = vmatpush1.xpose.msra.mxu0 %v649
    %657 = vmatprep.subr.mxu0 0.0
    %658 = vmatpush1.xpose.msra.mxu0 0.0
    %659 = vmatprep.subr.mxu0 0.0
    %660 = vmatpush1.xpose.msra.mxu0 0.0
    %661 = vmatprep.subr.mxu0 0.0
    %662 = vmatpush1.xpose.msra.mxu0 0.0
    %663 = vmatprep.subr.mxu0 0.0
    %664 = vmatpush1.xpose.msra.mxu0 0.0
    %665 = vmatprep.subr.mxu0 0.0
    %666 = vmatpush1.xpose.msra.mxu0 0.0
    %667 = vmatprep.subr.mxu0 0.0
    %668 = vmatpush1.xpose.msra.mxu0 0.0
    %669 = vmatprep.subr.mxu0 0.0
    %670 = vmatpush1.xpose.msra.mxu0 0.0
    %671 = vmatprep.subr.mxu0 0.0
    %672 = vmatpush1.xpose.msra.mxu0 0.0
    %673 = vmatprep.subr.mxu0 0.0
    %674 = vmatpush1.xpose.msra.mxu0 0.0
    %675 = vmatprep.subr.mxu0 0.0
    %676 = vmatpush1.xpose.msra.mxu0 0.0
    %677 = vmatprep.subr.mxu0 0.0
    %678 = vmatpush1.xpose.msra.mxu0 0.0
    %679 = vmatprep.subr.mxu0 0.0
    %680 = vmatpush1.xpose.msra.mxu0 0.0
    %681 = vmatprep.subr.mxu0 0.0
    %682 = vmatpush1.xpose.msra.mxu0 0.0
    %683 = vmatprep.subr.mxu0 0.0
    %684 = vmatpush1.xpose.msra.mxu0 0.0
    %685 = vmatprep.subr.mxu0 0.0
    %686 = vmatpush1.xpose.msra.mxu0 0.0
    %687 = vmatprep.subr.mxu0 0.0
    %688 = vmatpush1.xpose.msra.mxu0 0.0
    %689 = vmatprep.subr.mxu0 0.0
    %690 = vmatpush1.xpose.msra.mxu0 0.0
    %691 = vmatprep.subr.mxu0 0.0
    %692 = vmatpush1.xpose.msra.mxu0 0.0
    %693 = vmatprep.subr.mxu0 0.0
    %694 = vmatpush1.xpose.msra.mxu0 0.0
    %695 = vmatprep.subr.mxu0 0.0
    %696 = vmatpush1.xpose.msra.mxu0 0.0
    %697 = vmatprep.subr.mxu0 0.0
    %698 = vmatpush1.xpose.msra.mxu0 0.0
    %699 = vmatprep.subr.mxu0 0.0
    %700 = vmatpush1.xpose.msra.mxu0 0.0
    %701 = vmatprep.subr.mxu0 0.0
    %702 = vmatpush1.xpose.msra.mxu0 0.0
    %703 = vmatprep.subr.mxu0 0.0
    %704 = vmatpush1.xpose.msra.mxu0 0.0
    %705 = vmatprep.subr.mxu0 0.0
    %706 = vmatpush1.xpose.msra.mxu0 0.0
    %707 = vmatprep.subr.mxu0 0.0
    %708 = vmatpush1.xpose.msra.mxu0 0.0
    %709 = vmatprep.subr.mxu0 0.0
    %710 = vmatpush1.xpose.msra.mxu0 0.0
    %711 = vmatprep.subr.mxu0 0.0
    %712 = vmatpush1.xpose.msra.mxu0 0.0
    %713 = vmatprep.subr.mxu0 0.0
    %714 = vmatpush1.xpose.msra.mxu0 0.0
    %715 = vmatprep.mubr.f32.mxu0 0.0
    %716 = vmatmul.mubr.f32.gmra.mrb[0].mxu0 %v639
    %v717 = vpop.f32.mrb[0].mxu0
    %v718 = vadd.f32 0.0, %v717
    %v719 = vpop.f32.mrb[0].mxu0
    %720 = vmatprep.mubr.f32.mxu0 0.0
    %721 = vmatmul.mubr.f32.gmra.mrb[0].mxu0 %v641
    %v722 = vpop.f32.mrb[0].mxu0
    %v723 = vadd.f32 0.0, %v722
    %v724 = vpop.f32.mrb[0].mxu0
    %725 = vmatprep.mubr.f32.mxu0 0.0
    %726 = vmatmul.mubr.f32.gmra.mrb[0].mxu0 %v643
    %v727 = vpop.f32.mrb[0].mxu0
    %v728 = vadd.f32 0.0, %v727
    %v729 = vpop.f32.mrb[0].mxu0
    %730 = vdwg.mxu0
    %v731 = vsel %vm485, %v718, -inf
    %732 = vmax.xlane.f32.xlu0 %v731
    %v733 = vpop.xlane.xlu0 %732
    %v734 = vsel %vm485, %v723, -inf
    %735 = vmax.xlane.f32.xlu0 %v734
    %v736 = vpop.xlane.xlu0 %735
    %v737 = vsel %vm492, %v728, -inf
    %738 = vmax.xlane.f32.xlu0 %v737
    %v739 = vpop.xlane.xlu0 %738
    %v740 = vsub.f32 %v718, %v733
    %v741 = vsub.f32 %v723, %v736
    %v742 = vsub.f32 %v728, %v739
    %v743 = vmul.f32 %v740, 1.442695
    %v744 = vpow.pop %v743
    %v745 = vmul.f32 %v741, 1.442695
    %v746 = vpow.pop %v745
    %v747 = vmul.f32 %v742, 1.442695
    %v748 = vpow.pop %v747
    %v749 = vsel %vm485, %v744, 0.0
    %750 = vadd.xlane.f32.xlu0 %v749
    %v751 = vpop.xlane.xlu0 %750
    %v752 = vsel %vm485, %v746, 0.0
    %753 = vadd.xlane.f32.xlu0 %v752
    %v754 = vpop.xlane.xlu0 %753
    %v755 = vsel %vm492, %v748, 0.0
    %756 = vadd.xlane.f32.xlu0 %v755
    %v757 = vpop.xlane.xlu0 %756
    %v758 = vrcp.pop %v751
    %v759 = vrcp.pop %v754
    %v760 = vrcp.pop %v757
    %v761 = vmul.f32 %v758, 0.17677669
    %v762 = vmul.f32 %v759, 0.17677669
    %v763 = vmul.f32 %v760, 0.17677669
    %v764 = vmul.f32 %v744, %v761
    %v765 = vmul.f32 %v746, %v762
    %v766 = vmul.f32 %v748, %v763
    %767 = vrot.lane.b32.xlu0 %v356, 48
    %v768 = vpop.permute.xlu0 %767
    %769 = vrot.lane.b32.xlu0 %v361, 48
    %v770 = vpop.permute.xlu0 %769
    %771 = vrot.lane.b32.xlu0 %v366, 48
    %v772 = vpop.permute.xlu0 %771
    %v776 = vsel %vm485, %v764, 0
    %v779 = vsel %vm485, %v765, 0
    %v782 = vsel %vm485, %v766, 0
    %v784 = vsel %vm540, %v772, 0
    %786 = vmatprep.subr.mxu0 0.0
    %787 = vmatpush1.msra.mxu0 %v768
    %788 = vmatprep.subr.mxu0 0.0
    %789 = vmatpush1.msra.mxu0 %v770
    %790 = vmatprep.subr.mxu0 0.0
    %791 = vmatpush1.msra.mxu0 %v784
    %792 = vmatprep.subr.mxu0 0.0
    %793 = vmatpush1.msra.mxu0 0.0
    %794 = vmatprep.subr.mxu0 0.0
    %795 = vmatpush1.msra.mxu0 0.0
    %796 = vmatprep.subr.mxu0 0.0
    %797 = vmatpush1.msra.mxu0 0.0
    %798 = vmatprep.subr.mxu0 0.0
    %799 = vmatpush1.msra.mxu0 0.0
    %800 = vmatprep.subr.mxu0 0.0
    %801 = vmatpush1.msra.mxu0 0.0
    %802 = vmatprep.subr.mxu0 0.0
    %803 = vmatpush1.msra.mxu0 0.0
    %804 = vmatprep.subr.mxu0 0.0
    %805 = vmatpush1.msra.mxu0 0.0
    %806 = vmatprep.subr.mxu0 0.0
    %807 = vmatpush1.msra.mxu0 0.0
    %808 = vmatprep.subr.mxu0 0.0
    %809 = vmatpush1.msra.mxu0 0.0
    %810 = vmatprep.subr.mxu0 0.0
    %811 = vmatpush1.msra.mxu0 0.0
    %812 = vmatprep.subr.mxu0 0.0
    %813 = vmatpush1.msra.mxu0 0.0
    %814 = vmatprep.subr.mxu0 0.0
    %815 = vmatpush1.msra.mxu0 0.0
    %816 = vmatprep.subr.mxu0 0.0
    %817 = vmatpush1.msra.mxu0 0.0
    %818 = vmatprep.subr.mxu0 0.0
    %819 = vmatpush1.msra.mxu0 0.0
    %820 = vmatprep.subr.mxu0 0.0
    %821 = vmatpush1.msra.mxu0 0.0
    %822 = vmatprep.subr.mxu0 0.0
    %823 = vmatpush1.msra.mxu0 0.0
    %824 = vmatprep.subr.mxu0 0.0
    %825 = vmatpush1.msra.mxu0 0.0
    %826 = vmatprep.subr.mxu0 0.0
    %827 = vmatpush1.msra.mxu0 0.0
    %828 = vmatprep.subr.mxu0 0.0
    %829 = vmatpush1.msra.mxu0 0.0
    %830 = vmatprep.subr.mxu0 0.0
    %831 = vmatpush1.msra.mxu0 0.0
    %832 = vmatprep.subr.mxu0 0.0
    %833 = vmatpush1.msra.mxu0 0.0
    %834 = vmatprep.subr.mxu0 0.0
    %835 = vmatpush1.msra.mxu0 0.0
    %836 = vmatprep.subr.mxu0 0.0
    %837 = vmatpush1.msra.mxu0 0.0
    %838 = vmatprep.subr.mxu0 0.0
    %839 = vmatpush1.msra.mxu0 0.0
    %840 = vmatprep.subr.mxu0 0.0
    %841 = vmatpush1.msra.mxu0 0.0
    %842 = vmatprep.subr.mxu0 0.0
    %843 = vmatpush1.msra.mxu0 0.0
    %844 = vmatprep.subr.mxu0 0.0
    %845 = vmatpush1.msra.mxu0 0.0
    %846 = vmatprep.subr.mxu0 0.0
    %847 = vmatpush1.msra.mxu0 0.0
    %848 = vmatprep.subr.mxu0 0.0
    %849 = vmatpush1.msra.mxu0 0.0
    %850 = vmatprep.mubr.f32.mxu0 0.0
    %851 = vmatmul.mubr.f32.gmra.mrb[0].mxu0 %v776
    %v852 = vpop.f32.mrb[0].mxu0
    %v853 = vadd.f32 0.0, %v852
    %v854 = vpop.f32.mrb[0].mxu0
    %855 = vmatprep.mubr.f32.mxu0 0.0
    %856 = vmatmul.mubr.f32.gmra.mrb[0].mxu0 %v779
    %v857 = vpop.f32.mrb[0].mxu0
    %v858 = vadd.f32 0.0, %v857
    %v859 = vpop.f32.mrb[0].mxu0
    %860 = vmatprep.mubr.f32.mxu0 0.0
    %861 = vmatmul.mubr.f32.gmra.mrb[0].mxu0 %v782
    %v862 = vpop.f32.mrb[0].mxu0
    %v863 = vadd.f32 0.0, %v862
    %v864 = vpop.f32.mrb[0].mxu0
    %865 = vdwg.mxu0
    %869 = vrot.lane.b32.xlu0 %v853, 16
    %v870 = vpop.permute.xlu0 %869
    %871 = vrot.lane.b32.xlu0 %v858, 16
    %v872 = vpop.permute.xlu0 %871
    %873 = vrot.lane.b32.xlu0 %v863, 16
    %v874 = vpop.permute.xlu0 %873
    %vm878 = vcmask 261248
    %879 = vst.msk [vmem:[#allocation3] sm:$0xff] %vm878, %v870
    %880 = vst.msk [vmem:[#allocation3 + $0x8] sm:$0xff] %vm878, %v872
    %vm881 = vcmask 258176
    %882 = vst.msk [vmem:[#allocation3 + $0x10] sm:$0x1f] %vm881, %v874
    %vm886 = vcmask 1042432
    %v887 = vrot.slane %v366, 5
    %v888 = vrot.slane %v371, 5
    %v889 = vsel %vm886, %v887, %v888
    %v890 = vrot.slane %v376, 5
    %v891 = vsel %vm886, %v888, %v890
    %v892 = vrot.slane %v381, 5
    %v893 = vsel %vm886, %v890, %v892
    %894 = vrot.lane.b32.xlu0 %v889, 96
    %v895 = vpop.permute.xlu0 %894
    %896 = vrot.lane.b32.xlu0 %v891, 96
    %v897 = vpop.permute.xlu0 %896
    %898 = vrot.lane.b32.xlu0 %v893, 96
    %v899 = vpop.permute.xlu0 %898
    %v900 = vsel %vm53, %v889, 0
    %v902 = vsel %vm53, %v891, 0
    %v904 = vsel %vm53, %v893, 0
    %v906 = vsel %vm53, %v895, 0
    %v908 = vsel %vm53, %v897, 0
    %v910 = vsel %vm53, %v899, 0
    %912 = vmatprep.subr.mxu0 0.0
    %913 = vmatpush1.xpose.msra.mxu0 %v906
    %914 = vmatprep.subr.mxu0 0.0
    %915 = vmatpush1.xpose.msra.mxu0 %v908
    %916 = vmatprep.subr.mxu0 0.0
    %917 = vmatpush1.xpose.msra.mxu0 %v910
    %918 = vmatprep.subr.mxu0 0.0
    %919 = vmatpush1.xpose.msra.mxu0 0.0
    %920 = vmatprep.subr.mxu0 0.0
    %921 = vmatpush1.xpose.msra.mxu0 0.0
    %922 = vmatprep.subr.mxu0 0.0
    %923 = vmatpush1.xpose.msra.mxu0 0.0
    %924 = vmatprep.subr.mxu0 0.0
    %925 = vmatpush1.xpose.msra.mxu0 0.0
    %926 = vmatprep.subr.mxu0 0.0
    %927 = vmatpush1.xpose.msra.mxu0 0.0
    %928 = vmatprep.subr.mxu0 0.0
    %929 = vmatpush1.xpose.msra.mxu0 0.0
    %930 = vmatprep.subr.mxu0 0.0
    %931 = vmatpush1.xpose.msra.mxu0 0.0
    %932 = vmatprep.subr.mxu0 0.0
    %933 = vmatpush1.xpose.msra.mxu0 0.0
    %934 = vmatprep.subr.mxu0 0.0
    %935 = vmatpush1.xpose.msra.mxu0 0.0
    %936 = vmatprep.subr.mxu0 0.0
    %937 = vmatpush1.xpose.msra.mxu0 0.0
    %938 = vmatprep.subr.mxu0 0.0
    %939 = vmatpush1.xpose.msra.mxu0 0.0
    %940 = vmatprep.subr.mxu0 0.0
    %941 = vmatpush1.xpose.msra.mxu0 0.0
    %942 = vmatprep.subr.mxu0 0.0
    %943 = vmatpush1.xpose.msra.mxu0 0.0
    %944 = vmatprep.subr.mxu0 0.0
    %945 = vmatpush1.xpose.msra.mxu0 0.0
    %946 = vmatprep.subr.mxu0 0.0
    %947 = vmatpush1.xpose.msra.mxu0 0.0
    %948 = vmatprep.subr.mxu0 0.0
    %949 = vmatpush1.xpose.msra.mxu0 0.0
    %950 = vmatprep.subr.mxu0 0.0
    %951 = vmatpush1.xpose.msra.mxu0 0.0
    %952 = vmatprep.subr.mxu0 0.0
    %953 = vmatpush1.xpose.msra.mxu0 0.0
    %954 = vmatprep.subr.mxu0 0.0
    %955 = vmatpush1.xpose.msra.mxu0 0.0
    %956 = vmatprep.subr.mxu0 0.0
    %957 = vmatpush1.xpose.msra.mxu0 0.0
    %958 = vmatprep.subr.mxu0 0.0
    %959 = vmatpush1.xpose.msra.mxu0 0.0
    %960 = vmatprep.subr.mxu0 0.0
    %961 = vmatpush1.xpose.msra.mxu0 0.0
    %962 = vmatprep.subr.mxu0 0.0
    %963 = vmatpush1.xpose.msra.mxu0 0.0
    %964 = vmatprep.subr.mxu0 0.0
    %965 = vmatpush1.xpose.msra.mxu0 0.0
    %966 = vmatprep.subr.mxu0 0.0
    %967 = vmatpush1.xpose.msra.mxu0 0.0
    %968 = vmatprep.subr.mxu0 0.0
    %969 = vmatpush1.xpose.msra.mxu0 0.0
    %970 = vmatprep.subr.mxu0 0.0
    %971 = vmatpush1.xpose.msra.mxu0 0.0
    %972 = vmatprep.subr.mxu0 0.0
    %973 = vmatpush1.xpose.msra.mxu0 0.0
    %974 = vmatprep.subr.mxu0 0.0
    %975 = vmatpush1.xpose.msra.mxu0 0.0
    %976 = vmatprep.mubr.f32.mxu0 0.0
    %977 = vmatmul.mubr.f32.gmra.mrb[0].mxu0 %v900
    %v978 = vpop.f32.mrb[0].mxu0
    %v979 = vadd.f32 0.0, %v978
    %v980 = vpop.f32.mrb[0].mxu0
    %981 = vmatprep.mubr.f32.mxu0 0.0
    %982 = vmatmul.mubr.f32.gmra.mrb[0].mxu0 %v902
    %v983 = vpop.f32.mrb[0].mxu0
    %v984 = vadd.f32 0.0, %v983
    %v985 = vpop.f32.mrb[0].mxu0
    %986 = vmatprep.mubr.f32.mxu0 0.0
    %987 = vmatmul.mubr.f32.gmra.mrb[0].mxu0 %v904
    %v988 = vpop.f32.mrb[0].mxu0
    %v989 = vadd.f32 0.0, %v988
    %v990 = vpop.f32.mrb[0].mxu0
    %991 = vdwg.mxu0
    %v992 = vsel %vm485, %v979, -inf
    %993 = vmax.xlane.f32.xlu0 %v992
    %v994 = vpop.xlane.xlu0 %993
    %v995 = vsel %vm485, %v984, -inf
    %996 = vmax.xlane.f32.xlu0 %v995
    %v997 = vpop.xlane.xlu0 %996
    %v998 = vsel %vm492, %v989, -inf
    %999 = vmax.xlane.f32.xlu0 %v998
    %v1000 = vpop.xlane.xlu0 %999
    %v1001 = vsub.f32 %v979, %v994
    %v1002 = vsub.f32 %v984, %v997
    %v1003 = vsub.f32 %v989, %v1000
    %v1004 = vmul.f32 %v1001, 1.442695
    %v1005 = vpow.pop %v1004
    %v1006 = vmul.f32 %v1002, 1.442695
    %v1007 = vpow.pop %v1006
    %v1008 = vmul.f32 %v1003, 1.442695
    %v1009 = vpow.pop %v1008
    %v1010 = vsel %vm485, %v1005, 0.0
    %1011 = vadd.xlane.f32.xlu0 %v1010
    %v1012 = vpop.xlane.xlu0 %1011
    %v1013 = vsel %vm485, %v1007, 0.0
    %1014 = vadd.xlane.f32.xlu0 %v1013
    %v1015 = vpop.xlane.xlu0 %1014
    %v1016 = vsel %vm492, %v1009, 0.0
    %1017 = vadd.xlane.f32.xlu0 %v1016
    %v1018 = vpop.xlane.xlu0 %1017
    %v1019 = vrcp.pop %v1012
    %v1020 = vrcp.pop %v1015
    %v1021 = vrcp.pop %v1018
    %v1022 = vmul.f32 %v1019, 0.17677669
    %v1023 = vmul.f32 %v1020, 0.17677669
    %v1024 = vmul.f32 %v1021, 0.17677669
    %v1025 = vmul.f32 %v1005, %v1022
    %v1026 = vmul.f32 %v1007, %v1023
    %v1027 = vmul.f32 %v1009, %v1024
    %1028 = vrot.lane.b32.xlu0 %v889, 64
    %v1029 = vpop.permute.xlu0 %1028
    %1030 = vrot.lane.b32.xlu0 %v891, 64
    %v1031 = vpop.permute.xlu0 %1030
    %1032 = vrot.lane.b32.xlu0 %v893, 64
    %v1033 = vpop.permute.xlu0 %1032
    %v1037 = vsel %vm485, %v1025, 0
    %v1040 = vsel %vm485, %v1026, 0
    %v1043 = vsel %vm485, %v1027, 0
    %v1045 = vsel %vm540, %v1033, 0
    %1047 = vmatprep.subr.mxu0 0.0
    %1048 = vmatpush1.msra.mxu0 %v1029
    %1049 = vmatprep.subr.mxu0 0.0
    %1050 = vmatpush1.msra.mxu0 %v1031
    %1051 = vmatprep.subr.mxu0 0.0
    %1052 = vmatpush1.msra.mxu0 %v1045
    %1053 = vmatprep.subr.mxu0 0.0
    %1054 = vmatpush1.msra.mxu0 0.0
    %1055 = vmatprep.subr.mxu0 0.0
    %1056 = vmatpush1.msra.mxu0 0.0
    %1057 = vmatprep.subr.mxu0 0.0
    %1058 = vmatpush1.msra.mxu0 0.0
    %1059 = vmatprep.subr.mxu0 0.0
    %1060 = vmatpush1.msra.mxu0 0.0
    %1061 = vmatprep.subr.mxu0 0.0
    %1062 = vmatpush1.msra.mxu0 0.0
    %1063 = vmatprep.subr.mxu0 0.0
    %1064 = vmatpush1.msra.mxu0 0.0
    %1065 = vmatprep.subr.mxu0 0.0
    %1066 = vmatpush1.msra.mxu0 0.0
    %1067 = vmatprep.subr.mxu0 0.0
    %1068 = vmatpush1.msra.mxu0 0.0
    %1069 = vmatprep.subr.mxu0 0.0
    %1070 = vmatpush1.msra.mxu0 0.0
    %1071 = vmatprep.subr.mxu0 0.0
    %1072 = vmatpush1.msra.mxu0 0.0
    %1073 = vmatprep.subr.mxu0 0.0
    %1074 = vmatpush1.msra.mxu0 0.0
    %1075 = vmatprep.subr.mxu0 0.0
    %1076 = vmatpush1.msra.mxu0 0.0
    %1077 = vmatprep.subr.mxu0 0.0
    %1078 = vmatpush1.msra.mxu0 0.0
    %1079 = vmatprep.subr.mxu0 0.0
    %1080 = vmatpush1.msra.mxu0 0.0
    %1081 = vmatprep.subr.mxu0 0.0
    %1082 = vmatpush1.msra.mxu0 0.0
    %1083 = vmatprep.subr.mxu0 0.0
    %1084 = vmatpush1.msra.mxu0 0.0
    %1085 = vmatprep.subr.mxu0 0.0
    %1086 = vmatpush1.msra.mxu0 0.0
    %1087 = vmatprep.subr.mxu0 0.0
    %1088 = vmatpush1.msra.mxu0 0.0
    %1089 = vmatprep.subr.mxu0 0.0
    %1090 = vmatpush1.msra.mxu0 0.0
    %1091 = vmatprep.subr.mxu0 0.0
    %1092 = vmatpush1.msra.mxu0 0.0
    %1093 = vmatprep.subr.mxu0 0.0
    %1094 = vmatpush1.msra.mxu0 0.0
    %1095 = vmatprep.subr.mxu0 0.0
    %1096 = vmatpush1.msra.mxu0 0.0
    %1097 = vmatprep.subr.mxu0 0.0
    %1098 = vmatpush1.msra.mxu0 0.0
    %1099 = vmatprep.subr.mxu0 0.0
    %1100 = vmatpush1.msra.mxu0 0.0
    %1101 = vmatprep.subr.mxu0 0.0
    %1102 = vmatpush1.msra.mxu0 0.0
    %1103 = vmatprep.subr.mxu0 0.0
    %1104 = vmatpush1.msra.mxu0 0.0
    %1105 = vmatprep.subr.mxu0 0.0
    %1106 = vmatpush1.msra.mxu0 0.0
    %1107 = vmatprep.subr.mxu0 0.0
    %1108 = vmatpush1.msra.mxu0 0.0
    %1109 = vmatprep.subr.mxu0 0.0
    %1110 = vmatpush1.msra.mxu0 0.0
    %1111 = vmatprep.mubr.f32.mxu0 0.0
    %1112 = vmatmul.mubr.f32.gmra.mrb[0].mxu0 %v1037
    %v1113 = vpop.f32.mrb[0].mxu0
    %v1114 = vadd.f32 0.0, %v1113
    %v1115 = vpop.f32.mrb[0].mxu0
    %1116 = vmatprep.mubr.f32.mxu0 0.0
    %1117 = vmatmul.mubr.f32.gmra.mrb[0].mxu0 %v1040
    %v1118 = vpop.f32.mrb[0].mxu0
    %v1119 = vadd.f32 0.0, %v1118
    %v1120 = vpop.f32.mrb[0].mxu0
    %1121 = vmatprep.mubr.f32.mxu0 0.0
    %1122 = vmatmul.mubr.f32.gmra.mrb[0].mxu0 %v1043
    %v1123 = vpop.f32.mrb[0].mxu0
    %v1124 = vadd.f32 0.0, %v1123
    %v1125 = vpop.f32.mrb[0].mxu0
    %1126 = vdwg.mxu0
    %1127 = vst.msk [vmem:[#allocation3 + $0x15] sm:$0xff] %vm53, %v1114
    %1128 = vst.msk [vmem:[#allocation3 + $0x1d] sm:$0xff] %vm53, %v1119
    %1129 = vst.msk [vmem:[#allocation3 + $0x25] sm:$0x1f] %vm625, %v1124
    %1130 = vrot.lane.b32.xlu0 %v889, 112
    %v1131 = vpop.permute.xlu0 %1130
    %1132 = vrot.lane.b32.xlu0 %v891, 112
    %v1133 = vpop.permute.xlu0 %1132
    %1134 = vrot.lane.b32.xlu0 %v893, 112
    %v1135 = vpop.permute.xlu0 %1134
    %1136 = vrot.lane.b32.xlu0 %v889, 80
    %v1137 = vpop.permute.xlu0 %1136
    %1138 = vrot.lane.b32.xlu0 %v891, 80
    %v1139 = vpop.permute.xlu0 %1138
    %1140 = vrot.lane.b32.xlu0 %v893, 80
    %v1141 = vpop.permute.xlu0 %1140
    %v1142 = vsel %vm53, %v1131, 0
    %v1144 = vsel %vm53, %v1133, 0
    %v1146 = vsel %vm53, %v1135, 0
    %v1148 = vsel %vm53, %v1137, 0
    %v1150 = vsel %vm53, %v1139, 0
    %v1152 = vsel %vm53, %v1141, 0
    %1154 = vmatprep.subr.mxu0 0.0
    %1155 = vmatpush1.xpose.msra.mxu0 %v1148
    %1156 = vmatprep.subr.mxu0 0.0
    %1157 = vmatpush1.xpose.msra.mxu0 %v1150
    %1158 = vmatprep.subr.mxu0 0.0
    %1159 = vmatpush1.xpose.msra.mxu0 %v1152
    %1160 = vmatprep.subr.mxu0 0.0
    %1161 = vmatpush1.xpose.msra.mxu0 0.0
    %1162 = vmatprep.subr.mxu0 0.0
    %1163 = vmatpush1.xpose.msra.mxu0 0.0
    %1164 = vmatprep.subr.mxu0 0.0
    %1165 = vmatpush1.xpose.msra.mxu0 0.0
    %1166 = vmatprep.subr.mxu0 0.0
    %1167 = vmatpush1.xpose.msra.mxu0 0.0
    %1168 = vmatprep.subr.mxu0 0.0
    %1169 = vmatpush1.xpose.msra.mxu0 0.0
    %1170 = vmatprep.subr.mxu0 0.0
    %1171 = vmatpush1.xpose.msra.mxu0 0.0
    %1172 = vmatprep.subr.mxu0 0.0
    %1173 = vmatpush1.xpose.msra.mxu0 0.0
    %1174 = vmatprep.subr.mxu0 0.0
    %1175 = vmatpush1.xpose.msra.mxu0 0.0
    %1176 = vmatprep.subr.mxu0 0.0
    %1177 = vmatpush1.xpose.msra.mxu0 0.0
    %1178 = vmatprep.subr.mxu0 0.0
    %1179 = vmatpush1.xpose.msra.mxu0 0.0
    %1180 = vmatprep.subr.mxu0 0.0
    %1181 = vmatpush1.xpose.msra.mxu0 0.0
    %1182 = vmatprep.subr.mxu0 0.0
    %1183 = vmatpush1.xpose.msra.mxu0 0.0
    %1184 = vmatprep.subr.mxu0 0.0
    %1185 = vmatpush1.xpose.msra.mxu0 0.0
    %1186 = vmatprep.subr.mxu0 0.0
    %1187 = vmatpush1.xpose.msra.mxu0 0.0
    %1188 = vmatprep.subr.mxu0 0.0
    %1189 = vmatpush1.xpose.msra.mxu0 0.0
    %1190 = vmatprep.subr.mxu0 0.0
    %1191 = vmatpush1.xpose.msra.mxu0 0.0
    %1192 = vmatprep.subr.mxu0 0.0
    %1193 = vmatpush1.xpose.msra.mxu0 0.0
    %1194 = vmatprep.subr.mxu0 0.0
    %1195 = vmatpush1.xpose.msra.mxu0 0.0
    %1196 = vmatprep.subr.mxu0 0.0
    %1197 = vmatpush1.xpose.msra.mxu0 0.0
    %1198 = vmatprep.subr.mxu0 0.0
    %1199 = vmatpush1.xpose.msra.mxu0 0.0
    %1200 = vmatprep.subr.mxu0 0.0
    %1201 = vmatpush1.xpose.msra.mxu0 0.0
    %1202 = vmatprep.subr.mxu0 0.0
    %1203 = vmatpush1.xpose.msra.mxu0 0.0
    %1204 = vmatprep.subr.mxu0 0.0
    %1205 = vmatpush1.xpose.msra.mxu0 0.0
    %1206 = vmatprep.subr.mxu0 0.0
    %1207 = vmatpush1.xpose.msra.mxu0 0.0
    %1208 = vmatprep.subr.mxu0 0.0
    %1209 = vmatpush1.xpose.msra.mxu0 0.0
    %1210 = vmatprep.subr.mxu0 0.0
    %1211 = vmatpush1.xpose.msra.mxu0 0.0
    %1212 = vmatprep.subr.mxu0 0.0
    %1213 = vmatpush1.xpose.msra.mxu0 0.0
    %1214 = vmatprep.subr.mxu0 0.0
    %1215 = vmatpush1.xpose.msra.mxu0 0.0
    %1216 = vmatprep.subr.mxu0 0.0
    %1217 = vmatpush1.xpose.msra.mxu0 0.0
    %1218 = vmatprep.mubr.f32.mxu0 0.0
    %1219 = vmatmul.mubr.f32.gmra.mrb[0].mxu0 %v1142
    %v1220 = vpop.f32.mrb[0].mxu0
    %v1221 = vadd.f32 0.0, %v1220
    %v1222 = vpop.f32.mrb[0].mxu0
    %1223 = vmatprep.mubr.f32.mxu0 0.0
    %1224 = vmatmul.mubr.f32.gmra.mrb[0].mxu0 %v1144
    %v1225 = vpop.f32.mrb[0].mxu0
    %v1226 = vadd.f32 0.0, %v1225
    %v1227 = vpop.f32.mrb[0].mxu0
    %1228 = vmatprep.mubr.f32.mxu0 0.0
    %1229 = vmatmul.mubr.f32.gmra.mrb[0].mxu0 %v1146
    %v1230 = vpop.f32.mrb[0].mxu0
    %v1231 = vadd.f32 0.0, %v1230
    %v1232 = vpop.f32.mrb[0].mxu0
    %1233 = vdwg.mxu0
    %v1234 = vsel %vm485, %v1221, -inf
    %1235 = vmax.xlane.f32.xlu0 %v1234
    %v1236 = vpop.xlane.xlu0 %1235
    %v1237 = vsel %vm485, %v1226, -inf
    %1238 = vmax.xlane.f32.xlu0 %v1237
    %v1239 = vpop.xlane.xlu0 %1238
    %v1240 = vsel %vm492, %v1231, -inf
    %1241 = vmax.xlane.f32.xlu0 %v1240
    %v1242 = vpop.xlane.xlu0 %1241
    %v1243 = vsub.f32 %v1221, %v1236
    %v1244 = vsub.f32 %v1226, %v1239
    %v1245 = vsub.f32 %v1231, %v1242
    %v1246 = vmul.f32 %v1243, 1.442695
    %v1247 = vpow.pop %v1246
    %v1248 = vmul.f32 %v1244, 1.442695
    %v1249 = vpow.pop %v1248
    %v1250 = vmul.f32 %v1245, 1.442695
    %v1251 = vpow.pop %v1250
    %v1252 = vsel %vm485, %v1247, 0.0
    %1253 = vadd.xlane.f32.xlu0 %v1252
    %v1254 = vpop.xlane.xlu0 %1253
    %v1255 = vsel %vm485, %v1249, 0.0
    %1256 = vadd.xlane.f32.xlu0 %v1255
    %v1257 = vpop.xlane.xlu0 %1256
    %v1258 = vsel %vm492, %v1251, 0.0
    %1259 = vadd.xlane.f32.xlu0 %v1258
    %v1260 = vpop.xlane.xlu0 %1259
    %v1261 = vrcp.pop %v1254
    %v1262 = vrcp.pop %v1257
    %v1263 = vrcp.pop %v1260
    %v1264 = vmul.f32 %v1261, 0.17677669
    %v1265 = vmul.f32 %v1262, 0.17677669
    %v1266 = vmul.f32 %v1263, 0.17677669
    %v1267 = vmul.f32 %v1247, %v1264
    %v1268 = vmul.f32 %v1249, %v1265
    %v1269 = vmul.f32 %v1251, %v1266
    %1270 = vrot.lane.b32.xlu0 %v889, 48
    %v1271 = vpop.permute.xlu0 %1270
    %1272 = vrot.lane.b32.xlu0 %v891, 48
    %v1273 = vpop.permute.xlu0 %1272
    %1274 = vrot.lane.b32.xlu0 %v893, 48
    %v1275 = vpop.permute.xlu0 %1274
    %v1279 = vsel %vm485, %v1267, 0
    %v1282 = vsel %vm485, %v1268, 0
    %v1285 = vsel %vm485, %v1269, 0
    %v1287 = vsel %vm540, %v1275, 0
    %1289 = vmatprep.subr.mxu0 0.0
    %1290 = vmatpush1.msra.mxu0 %v1271
    %1291 = vmatprep.subr.mxu0 0.0
    %1292 = vmatpush1.msra.mxu0 %v1273
    %1293 = vmatprep.subr.mxu0 0.0
    %1294 = vmatpush1.msra.mxu0 %v1287
    %1295 = vmatprep.subr.mxu0 0.0
    %1296 = vmatpush1.msra.mxu0 0.0
    %1297 = vmatprep.subr.mxu0 0.0
    %1298 = vmatpush1.msra.mxu0 0.0
    %1299 = vmatprep.subr.mxu0 0.0
    %1300 = vmatpush1.msra.mxu0 0.0
    %1301 = vmatprep.subr.mxu0 0.0
    %1302 = vmatpush1.msra.mxu0 0.0
    %1303 = vmatprep.subr.mxu0 0.0
    %1304 = vmatpush1.msra.mxu0 0.0
    %1305 = vmatprep.subr.mxu0 0.0
    %1306 = vmatpush1.msra.mxu0 0.0
    %1307 = vmatprep.subr.mxu0 0.0
    %1308 = vmatpush1.msra.mxu0 0.0
    %1309 = vmatprep.subr.mxu0 0.0
    %1310 = vmatpush1.msra.mxu0 0.0
    %1311 = vmatprep.subr.mxu0 0.0
    %1312 = vmatpush1.msra.mxu0 0.0
    %1313 = vmatprep.subr.mxu0 0.0
    %1314 = vmatpush1.msra.mxu0 0.0
    %1315 = vmatprep.subr.mxu0 0.0
    %1316 = vmatpush1.msra.mxu0 0.0
    %1317 = vmatprep.subr.mxu0 0.0
    %1318 = vmatpush1.msra.mxu0 0.0
    %1319 = vmatprep.subr.mxu0 0.0
    %1320 = vmatpush1.msra.mxu0 0.0
    %1321 = vmatprep.subr.mxu0 0.0
    %1322 = vmatpush1.msra.mxu0 0.0
    %1323 = vmatprep.subr.mxu0 0.0
    %1324 = vmatpush1.msra.mxu0 0.0
    %1325 = vmatprep.subr.mxu0 0.0
    %1326 = vmatpush1.msra.mxu0 0.0
    %1327 = vmatprep.subr.mxu0 0.0
    %1328 = vmatpush1.msra.mxu0 0.0
    %1329 = vmatprep.subr.mxu0 0.0
    %1330 = vmatpush1.msra.mxu0 0.0
    %1331 = vmatprep.subr.mxu0 0.0
    %1332 = vmatpush1.msra.mxu0 0.0
    %1333 = vmatprep.subr.mxu0 0.0
    %1334 = vmatpush1.msra.mxu0 0.0
    %1335 = vmatprep.subr.mxu0 0.0
    %1336 = vmatpush1.msra.mxu0 0.0
    %1337 = vmatprep.subr.mxu0 0.0
    %1338 = vmatpush1.msra.mxu0 0.0
    %1339 = vmatprep.subr.mxu0 0.0
    %1340 = vmatpush1.msra.mxu0 0.0
    %1341 = vmatprep.subr.mxu0 0.0
    %1342 = vmatpush1.msra.mxu0 0.0
    %1343 = vmatprep.subr.mxu0 0.0
    %1344 = vmatpush1.msra.mxu0 0.0
    %1345 = vmatprep.subr.mxu0 0.0
    %1346 = vmatpush1.msra.mxu0 0.0
    %1347 = vmatprep.subr.mxu0 0.0
    %1348 = vmatpush1.msra.mxu0 0.0
    %1349 = vmatprep.subr.mxu0 0.0
    %1350 = vmatpush1.msra.mxu0 0.0
    %1351 = vmatprep.subr.mxu0 0.0
    %1352 = vmatpush1.msra.mxu0 0.0
    %1353 = vmatprep.mubr.f32.mxu0 0.0
    %1354 = vmatmul.mubr.f32.gmra.mrb[0].mxu0 %v1279
    %v1355 = vpop.f32.mrb[0].mxu0
    %v1356 = vadd.f32 0.0, %v1355
    %v1357 = vpop.f32.mrb[0].mxu0
    %1358 = vmatprep.mubr.f32.mxu0 0.0
    %1359 = vmatmul.mubr.f32.gmra.mrb[0].mxu0 %v1282
    %v1360 = vpop.f32.mrb[0].mxu0
    %v1361 = vadd.f32 0.0, %v1360
    %v1362 = vpop.f32.mrb[0].mxu0
    %1363 = vmatprep.mubr.f32.mxu0 0.0
    %1364 = vmatmul.mubr.f32.gmra.mrb[0].mxu0 %v1285
    %v1365 = vpop.f32.mrb[0].mxu0
    %v1366 = vadd.f32 0.0, %v1365
    %v1367 = vpop.f32.mrb[0].mxu0
    %1368 = vdwg.mxu0
    %1372 = vrot.lane.b32.xlu0 %v1356, 16
    %v1373 = vpop.permute.xlu0 %1372
    %1374 = vrot.lane.b32.xlu0 %v1361, 16
    %v1375 = vpop.permute.xlu0 %1374
    %1376 = vrot.lane.b32.xlu0 %v1366, 16
    %v1377 = vpop.permute.xlu0 %1376
    %1381 = vst.msk [vmem:[#allocation3 + $0x15] sm:$0xff] %vm878, %v1373
    %1382 = vst.msk [vmem:[#allocation3 + $0x1d] sm:$0xff] %vm878, %v1375
    %1383 = vst.msk [vmem:[#allocation3 + $0x25] sm:$0x1f] %vm881, %v1377
    %v1384 = vld [vmem:[#allocation3] sm:$0xff]
    %v1385 = vld [vmem:[#allocation3 + $0x8] sm:$0xff]
    %v1386 = vld [vmem:[#allocation3 + $0x10] sm:$0xff]
    %v1387 = vld [vmem:[#allocation3 + $0x18] sm:$0xff]
    %v1388 = vld [vmem:[#allocation3 + $0x20] sm:$0xff]
    %v1389 = vld [vmem:[#allocation3 + $0x28] sm:$0x3]
    %v1390 = vlaneseq
    %v1391 = vshrl.u32 %v1390, 7
    %v1392 = vsub.s32 0, %v1391
    %v1393 = vrot.slane %v39, %v1392
    %v1395 = vsel %vm154, %v1384, 0
    %v1398 = vsel %vm154, %v1385, 0
    %v1401 = vsel %vm154, %v1386, 0
    %v1404 = vsel %vm154, %v1387, 0
    %v1407 = vsel %vm154, %v1388, 0
    %v1410 = vsel %vm154, %v1389, 0
    %1412 = vmatprep.subr.mxu0 0.0
    %1413 = vmatpush1.msra.mxu0 %v27
    %1414 = vmatprep.subr.mxu0 0.0
    %1415 = vmatpush1.msra.mxu0 %v28
    %1416 = vmatprep.subr.mxu0 0.0
    %1417 = vmatpush1.msra.mxu0 %v29
    %1418 = vmatprep.subr.mxu0 0.0
    %1419 = vmatpush1.msra.mxu0 %v30
    %1420 = vmatprep.subr.mxu0 0.0
    %1421 = vmatpush1.msra.mxu0 0.0
    %1422 = vmatprep.subr.mxu0 0.0
    %1423 = vmatpush1.msra.mxu0 0.0
    %1424 = vmatprep.subr.mxu0 0.0
    %1425 = vmatpush1.msra.mxu0 0.0
    %1426 = vmatprep.subr.mxu0 0.0
    %1427 = vmatpush1.msra.mxu0 0.0
    %1428 = vmatprep.subr.mxu0 0.0
    %1429 = vmatpush1.msra.mxu0 0.0
    %1430 = vmatprep.subr.mxu0 0.0
    %1431 = vmatpush1.msra.mxu0 0.0
    %1432 = vmatprep.subr.mxu0 0.0
    %1433 = vmatpush1.msra.mxu0 0.0
    %1434 = vmatprep.subr.mxu0 0.0
    %1435 = vmatpush1.msra.mxu0 0.0
    %1436 = vmatprep.subr.mxu0 0.0
    %1437 = vmatpush1.msra.mxu0 0.0
    %1438 = vmatprep.subr.mxu0 0.0
    %1439 = vmatpush1.msra.mxu0 0.0
    %1440 = vmatprep.subr.mxu0 0.0
    %1441 = vmatpush1.msra.mxu0 0.0
    %1442 = vmatprep.subr.mxu0 0.0
    %1443 = vmatpush1.msra.mxu0 0.0
    %1444 = vmatprep.subr.mxu0 0.0
    %1445 = vmatpush1.msra.mxu0 0.0
    %1446 = vmatprep.subr.mxu0 0.0
    %1447 = vmatpush1.msra.mxu0 0.0
    %1448 = vmatprep.subr.mxu0 0.0
    %1449 = vmatpush1.msra.mxu0 0.0
    %1450 = vmatprep.subr.mxu0 0.0
    %1451 = vmatpush1.msra.mxu0 0.0
    %1452 = vmatprep.subr.mxu0 0.0
    %1453 = vmatpush1.msra.mxu0 0.0
    %1454 = vmatprep.subr.mxu0 0.0
    %1455 = vmatpush1.msra.mxu0 0.0
    %1456 = vmatprep.subr.mxu0 0.0
    %1457 = vmatpush1.msra.mxu0 0.0
    %1458 = vmatprep.subr.mxu0 0.0
    %1459 = vmatpush1.msra.mxu0 0.0
    %1460 = vmatprep.subr.mxu0 0.0
    %1461 = vmatpush1.msra.mxu0 0.0
    %1462 = vmatprep.subr.mxu0 0.0
    %1463 = vmatpush1.msra.mxu0 0.0
    %1464 = vmatprep.subr.mxu0 0.0
    %1465 = vmatpush1.msra.mxu0 0.0
    %1466 = vmatprep.subr.mxu0 0.0
    %1467 = vmatpush1.msra.mxu0 0.0
    %1468 = vmatprep.subr.mxu0 0.0
    %1469 = vmatpush1.msra.mxu0 0.0
    %1470 = vmatprep.subr.mxu0 0.0
    %1471 = vmatpush1.msra.mxu0 0.0
    %1472 = vmatprep.subr.mxu0 0.0
    %1473 = vmatpush1.msra.mxu0 0.0
    %1474 = vmatprep.subr.mxu0 0.0
    %1475 = vmatpush1.msra.mxu0 0.0
    %1476 = vmatprep.mubr.f32.mxu0 0.0
    %1477 = vmatmul.mubr.f32.gmra.mrb[0].mxu0 %v1395
    %v1478 = vpop.f32.mrb[0].mxu0
    %v1479 = vadd.f32 %v1393, %v1478
    %v1480 = vpop.f32.mrb[0].mxu0
    %1481 = vmatprep.mubr.f32.mxu0 0.0
    %1482 = vmatmul.mubr.f32.gmra.mrb[0].mxu0 %v1398
    %v1483 = vpop.f32.mrb[0].mxu0
    %v1484 = vadd.f32 %v1393, %v1483
    %v1485 = vpop.f32.mrb[0].mxu0
    %1486 = vmatprep.mubr.f32.mxu0 0.0
    %1487 = vmatmul.mubr.f32.gmra.mrb[0].mxu0 %v1401
    %v1488 = vpop.f32.mrb[0].mxu0
    %v1489 = vadd.f32 %v1393, %v1488
    %v1490 = vpop.f32.mrb[0].mxu0
    %1491 = vmatprep.mubr.f32.mxu0 0.0
    %1492 = vmatmul.mubr.f32.gmra.mrb[0].mxu0 %v1404
    %v1493 = vpop.f32.mrb[0].mxu0
    %v1494 = vadd.f32 %v1393, %v1493
    %v1495 = vpop.f32.mrb[0].mxu0
    %1496 = vmatprep.mubr.f32.mxu0 0.0
    %1497 = vmatmul.mubr.f32.gmra.mrb[0].mxu0 %v1407
    %v1498 = vpop.f32.mrb[0].mxu0
    %v1499 = vadd.f32 %v1393, %v1498
    %v1500 = vpop.f32.mrb[0].mxu0
    %1501 = vmatprep.mubr.f32.mxu0 0.0
    %1502 = vmatmul.mubr.f32.gmra.mrb[0].mxu0 %v1410
    %v1503 = vpop.f32.mrb[0].mxu0
    %v1504 = vadd.f32 %v1393, %v1503
    %v1505 = vpop.f32.mrb[0].mxu0
    %1506 = vdwg.mxu0
    %v1507 = vsel %vm154, %v1479, 0.0
    %1508 = vadd.xlane.f32.xlu0 %v1507
    %v1509 = vpop.xlane.xlu0 %1508
    %v1510 = vsel %vm154, %v1484, 0.0
    %1511 = vadd.xlane.f32.xlu0 %v1510
    %v1512 = vpop.xlane.xlu0 %1511
    %v1513 = vsel %vm154, %v1489, 0.0
    %1514 = vadd.xlane.f32.xlu0 %v1513
    %v1515 = vpop.xlane.xlu0 %1514
    %v1516 = vsel %vm154, %v1494, 0.0
    %1517 = vadd.xlane.f32.xlu0 %v1516
    %v1518 = vpop.xlane.xlu0 %1517
    %v1519 = vsel %vm154, %v1499, 0.0
    %1520 = vadd.xlane.f32.xlu0 %v1519
    %v1521 = vpop.xlane.xlu0 %1520
    %v1522 = vsel %vm182, %v1504, 0.0
    %1523 = vadd.xlane.f32.xlu0 %v1522
    %v1524 = vpop.xlane.xlu0 %1523
    %v1525 = vmul.f32 %v1509, %v186
    %v1526 = vmul.f32 %v1512, %v186
    %v1527 = vmul.f32 %v1515, %v186
    %v1528 = vmul.f32 %v1518, %v186
    %v1529 = vmul.f32 %v1521, %v186
    %v1530 = vmul.f32 %v1524, %v186
    %v1531 = vsub.f32 %v1479, %v1525
    %v1532 = vsub.f32 %v1484, %v1526
    %v1533 = vsub.f32 %v1489, %v1527
    %v1534 = vsub.f32 %v1494, %v1528
    %v1535 = vsub.f32 %v1499, %v1529
    %v1536 = vsub.f32 %v1504, %v1530
    %v1537 = vmul.f32 %v1531, %v1531
    %v1538 = vmul.f32 %v1532, %v1532
    %v1539 = vmul.f32 %v1533, %v1533
    %v1540 = vmul.f32 %v1534, %v1534
    %v1541 = vmul.f32 %v1535, %v1535
    %v1542 = vmul.f32 %v1536, %v1536
    %v1543 = vsel %vm154, %v1537, 0.0
    %1544 = vadd.xlane.f32.xlu0 %v1543
    %v1545 = vpop.xlane.xlu0 %1544
    %v1546 = vsel %vm154, %v1538, 0.0
    %1547 = vadd.xlane.f32.xlu0 %v1546
    %v1548 = vpop.xlane.xlu0 %1547
    %v1549 = vsel %vm154, %v1539, 0.0
    %1550 = vadd.xlane.f32.xlu0 %v1549
    %v1551 = vpop.xlane.xlu0 %1550
    %v1552 = vsel %vm154, %v1540, 0.0
    %1553 = vadd.xlane.f32.xlu0 %v1552
    %v1554 = vpop.xlane.xlu0 %1553
    %v1555 = vsel %vm154, %v1541, 0.0
    %1556 = vadd.xlane.f32.xlu0 %v1555
    %v1557 = vpop.xlane.xlu0 %1556
    %v1558 = vsel %vm182, %v1542, 0.0
    %1559 = vadd.xlane.f32.xlu0 %v1558
    %v1560 = vpop.xlane.xlu0 %1559
    %v1561 = vmul.f32 %v1545, %v186
    %v1562 = vmul.f32 %v1548, %v186
    %v1563 = vmul.f32 %v1551, %v186
    %v1564 = vmul.f32 %v1554, %v186
    %v1565 = vmul.f32 %v1557, %v186
    %v1566 = vmul.f32 %v1560, %v186
    %v1567 = vadd.f32 %v1561, 1e-05
    %v1568 = vadd.f32 %v1562, 1e-05
    %v1569 = vadd.f32 %v1563, 1e-05
    %v1570 = vadd.f32 %v1564, 1e-05
    %v1571 = vadd.f32 %v1565, 1e-05
    %v1572 = vadd.f32 %v1566, 1e-05
    %v1573 = vrsqrt.pop %v1567
    %v1574 = vrsqrt.pop %v1568
    %v1575 = vrsqrt.pop %v1569
    %v1576 = vrsqrt.pop %v1570
    %v1577 = vrsqrt.pop %v1571
    %v1578 = vrsqrt.pop %v1572
    %v1579 = vmul.f32 %v1531, %v1573
    %v1580 = vmul.f32 %v1532, %v1574
    %v1581 = vmul.f32 %v1533, %v1575
    %v1582 = vmul.f32 %v1534, %v1576
    %v1583 = vmul.f32 %v1535, %v1577
    %v1584 = vmul.f32 %v1536, %v1578
    %v1585 = vlaneseq
    %v1586 = vshrl.u32 %v1585, 7
    %v1587 = vsub.s32 0, %v1586
    %v1588 = vrot.slane %v40, %v1587
    %v1589 = vmul.f32 %v1579, %v1588
    %v1590 = vmul.f32 %v1580, %v1588
    %v1591 = vmul.f32 %v1581, %v1588
    %v1592 = vmul.f32 %v1582, %v1588
    %v1593 = vmul.f32 %v1583, %v1588
    %v1594 = vmul.f32 %v1584, %v1588
    %v1595 = vlaneseq
    %v1596 = vshrl.u32 %v1595, 7
    %v1597 = vsub.s32 0, %v1596
    %v1598 = vrot.slane %v41, %v1597
    %v1599 = vadd.f32 %v1589, %v1598
    %v1600 = vadd.f32 %v1590, %v1598
    %v1601 = vadd.f32 %v1591, %v1598
    %v1602 = vadd.f32 %v1592, %v1598
    %v1603 = vadd.f32 %v1593, %v1598
    %v1604 = vadd.f32 %v1594, %v1598
    %v1605 = vadd.f32 %v1599, %v161
    %v1606 = vadd.f32 %v1600, %v162
    %v1607 = vadd.f32 %v1601, %v163
    %v1608 = vadd.f32 %v1602, %v164
    %v1609 = vadd.f32 %v1603, %v165
    %v1610 = vadd.f32 %v1604, %v166
    %v1611 = vsel %vm154, %v1605, 0.0
    %v1612 = vsel %vm154, %v1606, 0.0
    %v1613 = vadd.f32 %v1611, %v1612
    %v1614 = vsel %vm152, %v1607, 0.0
    %v1615 = vadd.f32 %v1613, %v1614
    %v1616 = vrot.slane %v1615, 4
    %v1617 = vadd.f32 %v1615, %v1616
    %v1618 = vrot.slane %v1617, 2
    %v1619 = vadd.f32 %v1617, %v1618
    %v1620 = vrot.slane %v1619, 1
    %v1621 = vadd.f32 %v1619, %v1620
    %v1622 = vrcp.pop 21.0
    %v1623 = vmul.f32 %v1621, %v1622
    %vm1624 = vcmask 253952
    %1625 = vst.msk [vmem:[#allocation4] sm:$0x1] %vm1624, %v1623
    %v1630 = vrot.slane %v1607, 5
    %v1631 = vrot.slane %v1608, 5
    %v1632 = vsel %vm886, %v1630, %v1631
    %v1633 = vrot.slane %v1609, 5
    %v1634 = vsel %vm886, %v1631, %v1633
    %v1635 = vrot.slane %v1610, 5
    %v1636 = vsel %vm886, %v1633, %v1635
    %v1640 = vsel %vm154, %v1632, 0.0
    %v1641 = vsel %vm154, %v1634, 0.0
    %v1642 = vadd.f32 %v1640, %v1641
    %v1643 = vsel %vm152, %v1636, 0.0
    %v1644 = vadd.f32 %v1642, %v1643
    %v1645 = vrot.slane %v1644, 4
    %v1646 = vadd.f32 %v1644, %v1645
    %v1647 = vrot.slane %v1646, 2
    %v1648 = vadd.f32 %v1646, %v1647
    %v1649 = vrot.slane %v1648, 1
    %v1650 = vadd.f32 %v1648, %v1649
    %v1651 = vmul.f32 %v1650, %v1622
    %1652 = vst.msk [vmem:[#allocation4 + $0x1] sm:$0x1] %vm1624, %v1651
    %v1653 = vld [vmem:[#allocation4] sm:$0x3]
    %v1654 = vsel %vm182, %v1653, 0.0
    %1655 = vadd.xlane.f32.xlu0 %v1654
    %v1656 = vpop.xlane.xlu0 %1655
    %v1657 = vmul.f32 %v1656, %v186
    %v1658 = vsub.f32 %v1653, %v1657
    %v1659 = vmul.f32 %v1658, %v1658
    %v1660 = vsel %vm182, %v1659, 0.0
    %1661 = vadd.xlane.f32.xlu0 %v1660
    %v1662 = vpop.xlane.xlu0 %1661
    %v1663 = vmul.f32 %v1662, %v186
    %v1664 = vadd.f32 %v1663, 1e-05
    %v1665 = vrsqrt.pop %v1664
    %v1666 = vmul.f32 %v1658, %v1665
    %v1667 = vlaneseq
    %v1668 = vshrl.u32 %v1667, 7
    %v1669 = vsub.s32 0, %v1668
    %v1670 = vrot.slane %v42, %v1669
    %v1671 = vmul.f32 %v1666, %v1670
    %v1672 = vlaneseq
    %v1673 = vshrl.u32 %v1672, 7
    %v1674 = vsub.s32 0, %v1673
    %v1675 = vrot.slane %v43, %v1674
    %v1676 = vadd.f32 %v1671, %v1675
    %v1677 = vlaneseq
    %v1678 = vshrl.u32 %v1677, 7
    %v1679 = vsub.s32 0, %v1678
    %v1680 = vrot.slane %v44, %v1679
    %v1682 = vsel %vm154, %v1676, 0
    %1684 = vmatprep.subr.mxu0 0.0
    %1685 = vmatpush1.msra.mxu0 %v31
    %1686 = vmatprep.subr.mxu0 0.0
    %1687 = vmatpush1.msra.mxu0 %v32
    %1688 = vmatprep.subr.mxu0 0.0
    %1689 = vmatpush1.msra.mxu0 %v33
    %1690 = vmatprep.subr.mxu0 0.0
    %1691 = vmatpush1.msra.mxu0 %v34
    %1692 = vmatprep.subr.mxu0 0.0
    %1693 = vmatpush1.msra.mxu0 0.0
    %1694 = vmatprep.subr.mxu0 0.0
    %1695 = vmatpush1.msra.mxu0 0.0
    %1696 = vmatprep.subr.mxu0 0.0
    %1697 = vmatpush1.msra.mxu0 0.0
    %1698 = vmatprep.subr.mxu0 0.0
    %1699 = vmatpush1.msra.mxu0 0.0
    %1700 = vmatprep.subr.mxu0 0.0
    %1701 = vmatpush1.msra.mxu0 0.0
    %1702 = vmatprep.subr.mxu0 0.0
    %1703 = vmatpush1.msra.mxu0 0.0
    %1704 = vmatprep.subr.mxu0 0.0
    %1705 = vmatpush1.msra.mxu0 0.0
    %1706 = vmatprep.subr.mxu0 0.0
    %1707 = vmatpush1.msra.mxu0 0.0
    %1708 = vmatprep.subr.mxu0 0.0
    %1709 = vmatpush1.msra.mxu0 0.0
    %1710 = vmatprep.subr.mxu0 0.0
    %1711 = vmatpush1.msra.mxu0 0.0
    %1712 = vmatprep.subr.mxu0 0.0
    %1713 = vmatpush1.msra.mxu0 0.0
    %1714 = vmatprep.subr.mxu0 0.0
    %1715 = vmatpush1.msra.mxu0 0.0
    %1716 = vmatprep.subr.mxu0 0.0
    %1717 = vmatpush1.msra.mxu0 0.0
    %1718 = vmatprep.subr.mxu0 0.0
    %1719 = vmatpush1.msra.mxu0 0.0
    %1720 = vmatprep.subr.mxu0 0.0
    %1721 = vmatpush1.msra.mxu0 0.0
    %1722 = vmatprep.subr.mxu0 0.0
    %1723 = vmatpush1.msra.mxu0 0.0
    %1724 = vmatprep.subr.mxu0 0.0
    %1725 = vmatpush1.msra.mxu0 0.0
    %1726 = vmatprep.subr.mxu0 0.0
    %1727 = vmatpush1.msra.mxu0 0.0
    %1728 = vmatprep.subr.mxu0 0.0
    %1729 = vmatpush1.msra.mxu0 0.0
    %1730 = vmatprep.subr.mxu0 0.0
    %1731 = vmatpush1.msra.mxu0 0.0
    %1732 = vmatprep.subr.mxu0 0.0
    %1733 = vmatpush1.msra.mxu0 0.0
    %1734 = vmatprep.subr.mxu0 0.0
    %1735 = vmatpush1.msra.mxu0 0.0
    %1736 = vmatprep.subr.mxu0 0.0
    %1737 = vmatpush1.msra.mxu0 0.0
    %1738 = vmatprep.subr.mxu0 0.0
    %1739 = vmatpush1.msra.mxu0 0.0
    %1740 = vmatprep.subr.mxu0 0.0
    %1741 = vmatpush1.msra.mxu0 0.0
    %1742 = vmatprep.subr.mxu0 0.0
    %1743 = vmatpush1.msra.mxu0 0.0
    %1744 = vmatprep.subr.mxu0 0.0
    %1745 = vmatpush1.msra.mxu0 0.0
    %1746 = vmatprep.subr.mxu0 0.0
    %1747 = vmatpush1.msra.mxu0 0.0
    %1748 = vmatprep.mubr.f32.mxu0 0.0
    %1749 = vmatmul.mubr.f32.gmra.mrb[0].mxu0 %v1682
    %v1750 = vpop.f32.mrb[0].mxu0
    %v1751 = vadd.f32 %v1680, %v1750
    %v1752 = vpop.f32.mrb[0].mxu0
    %1753 = vdwg.mxu0
    %1754 = vst.msk [vmem:[#allocation5] sm:$0x3] %vm182, %v1751
    // Predicated region
    $region22: #{model_forward.1} parent=1 // pred_check
      _
    $region23: #{model_forward.1} parent=1 // pred_check_branch
      %1756 = sbr.rel (0) target = $region25
    $region24: #{model_forward.1} parent=1 // pred_region
      %s1758 = ssub.s32 32, 32
      %1759 = vsyncadd [#allocation6], %s1758
      %s1761 = sshll.u32 [#allocation5], 4
      %s1762 = int_to_ptr.vmem [resolvable:$true] %s1761
      %1764 = dma.vmem_to_hbm [thread:$0]  %s1762, 32, %s5, [#allocation6]
    $region25: #{model_forward.1} parent=1 // pred_fallthru
      _
    // Predicated region
    $region26: #{model_forward.1} parent=1 // pred_check
      _
    $region27: #{model_forward.1} parent=1 // pred_check_branch
      %1766 = sbr.rel (0) target = $region29
    $region28: #{model_forward.1} parent=1 // pred_region
      %1767 = dma.done [#allocation6], 32
    $region29: #{model_forward.1} parent=1 // pred_fallthru
      _
    %1768 = vsyncpa [#allocation6], 1

</llo_original>
